<compile_context>
chip_gen: v6e
topology: v6e:2x2x1
jax: 0.10.0
libtpu: 0.0.40
codegen_flags: <defaults>
</compile_context>

<pallas_src>
import functools

import jax
import jax.numpy as jnp
from jax.experimental import pallas as pl
from jax.experimental.pallas import tpu as pltpu


def _round_up(x, m):
    return (x + m - 1) // m * m


# ---------------------------------------------------------------------------
# Kernel A: fuse_enhance
#   sa    = sigmoid(conv7x7(max_c(r * d)))          (SpatialAttention, no bias)
#   r_ca  = sigmoid(W2 @ relu(W1 @ maxpool(r*sa)))  (ChannelAttention, max-pool
#   d_ca  = sigmoid(W2'@ relu(W1'@ maxpool(d*sa)))   only, as in the spec)
#   r_out = r * r_ca ; d_out = d * d_ca
# ---------------------------------------------------------------------------
def _fuse_enhance_kernel(bt, H, W, C,
                         r_ref, d_ref,            # VMEM (bt,H,W,C) bf16
                         tbd_ref,                 # VMEM (7W, W) banded conv weights
                         rw1_ref, rw2_ref,        # VMEM (C,C//r), (C//r,C) f32
                         dw1_ref, dw2_ref,
                         r_out_ref, d_out_ref):   # VMEM (bt,H,W,C) bf16
    tbd = tbd_ref[...]                                       # [7W, W] f32
    rw1, rw2 = rw1_ref[...], rw2_ref[...]
    dw1, dw2 = dw1_ref[...], dw2_ref[...]
    ridx = jax.lax.broadcasted_iota(jnp.int32, (H, W), 0)    # hoisted row index

    pooled_r, pooled_d = [], []
    for b in range(bt):                                      # small, unrolled
        rb = r_ref[b].astype(jnp.float32)                    # [H, W, C]
        db = d_ref[b].astype(jnp.float32)
        m = jnp.max(rb * db, axis=-1)                        # [H, W]

        # 7x7 "same" conv of the single-channel map:
        #   conv[i,j] = sum_a sum_q shifted_a[i,q] * T_a[q,j]
        # shifted_a built with sublane rolls (XLU) + an edge mask, stacked along
        # the contraction axis so the MXU sees one [H,7W] @ [7W,W] dot.
        parts = []
        for a in range(7):
            sft = (3 - a) % H
            rolled = m if sft == 0 else pltpu.roll(m, shift=sft, axis=0)
            if a == 3:
                parts.append(rolled)
            else:
                valid = (ridx >= 3 - a) & (ridx < H + 3 - a)
                parts.append(jnp.where(valid, rolled, 0.0))
        stacked = jnp.concatenate(parts, axis=-1)            # [H, 7W]
        conv = jnp.dot(stacked, tbd, preferred_element_type=jnp.float32)
        sa = jax.nn.sigmoid(conv)[:, :, None]                # [H, W, 1]

        pooled_r.append(jnp.max(jnp.max(rb * sa, axis=0), axis=0)[None, :])  # [1,C]
        pooled_d.append(jnp.max(jnp.max(db * sa, axis=0), axis=0)[None, :])

    pooled_r = pooled_r[0] if bt == 1 else jnp.concatenate(pooled_r, axis=0)
    pooled_d = pooled_d[0] if bt == 1 else jnp.concatenate(pooled_d, axis=0)

    # Batched channel attention: [bt, C] @ [C, C//r] -> relu -> @ [C//r, C]
    def chan_attn(pooled, w1, w2):
        h = jnp.maximum(jnp.dot(pooled, w1, preferred_element_type=jnp.float32), 0.0)
        return jax.nn.sigmoid(jnp.dot(h, w2, preferred_element_type=jnp.float32))

    r_ca = chan_attn(pooled_r, rw1, rw2)                     # [bt, C]
    d_ca = chan_attn(pooled_d, dw1, dw2)

    for b in range(bt):
        r_out_ref[b] = (r_ref[b].astype(jnp.float32)
                        * r_ca[b:b + 1, :].reshape(1, 1, C)).astype(r_out_ref.dtype)
        d_out_ref[b] = (d_ref[b].astype(jnp.float32)
                        * d_ca[b:b + 1, :].reshape(1, 1, C)).astype(d_out_ref.dtype)


def fuse_enhance_fwd(r, d, params, out_dtype=jnp.bfloat16, max_bt=8):
    """r, d: [B, H, W, C] (NHWC, bf16). Returns bf16 activations for the MLP."""
    B, H, W, C = r.shape
    Cr = params["r_w1"].shape[1]
    sa_w = params["sa_w"].astype(jnp.float32)                # [7, 7]

    # Host-side banded weight matrices T_a[q,j] = w[a, q-j+3] (zero outside the
    # 7-wide band), stacked over a -> a single [7W, W] MXU operand.
    wj = jnp.arange(W)
    diff = wj[:, None] - wj[None, :] + 3
    tbd = jnp.where((diff >= 0) & (diff <= 6), sa_w[:, jnp.clip(diff, 0, 6)], 0.0)
    tbd = tbd.reshape(7 * W, W).astype(jnp.float32)

    # Batch several images per grid step when the per-image footprint is small.
    img_bytes = H * W * C * jnp.dtype(r.dtype).itemsize
    bt = 1
    for cand in range(2, min(B, max_bt) + 1):
        if B % cand == 0 and cand * img_bytes <= (2 << 20):
            bt = cand

    const_bytes = (7 * W * W + 4 * C * Cr) * 4
    est = 4 * (bt * img_bytes) * 2 + 2 * const_bytes + (2 << 20)
    vmem_limit = int(min(48 << 20, max(16 << 20, 2 * est)))

    kern = functools.partial(_fuse_enhance_kernel, bt, H, W, C)
    feat_spec = lambda: pl.BlockSpec((bt, H, W, C), lambda b: (b, 0, 0, 0))

    def full(shape):
        return pl.BlockSpec(shape, lambda b, _s=shape: (0,) * len(_s))

    r_out, d_out = pl.pallas_call(
        kern,
        out_shape=[jax.ShapeDtypeStruct((B, H, W, C), out_dtype)] * 2,
        grid=(B // bt,),
        in_specs=[
            feat_spec(), feat_spec(),
            full((7 * W, W)),
            full((C, Cr)), full((Cr, C)), full((C, Cr)), full((Cr, C)),
        ],
        out_specs=[feat_spec(), feat_spec()],
        compiler_params=pltpu.CompilerParams(
            dimension_semantics=("parallel",),
            vmem_limit_bytes=vmem_limit),
    )(r, d, tbd, params["r_w1"], params["r_w2"], params["d_w1"], params["d_w2"])
    return r_out, d_out


# ---------------------------------------------------------------------------
# Kernel B: fc1 (1x1 conv, bias, concat fused) -> exact GELU ->
#           ConvTranspose2d(k=2,s=2) as a matmul producing the 4 (ki,kj)
#           sub-pixel outputs -> BN (inference) -> ReLU -> bf16 store.
# Rows = flattened (b, h, w) positions; matmul operands bf16, accumulate f32.
# ---------------------------------------------------------------------------
def _mlp_kernel(r_ref, d_ref, w1r_ref, w1d_ref, b1_ref, w2_ref,
                scale_ref, shift_ref, o_ref):
    w1r = w1r_ref[...]                                           # [C, 2*Hd] bf16
    w1d = w1d_ref[...]
    h = (jnp.dot(r_ref[...].astype(w1r.dtype), w1r,
                 preferred_element_type=jnp.float32)
         + jnp.dot(d_ref[...].astype(w1d.dtype), w1d,
                   preferred_element_type=jnp.float32)
         + b1_ref[...])                                          # [M, 2*Hd] f32
    # exact (erf-based) GELU, matching torch.nn.GELU()
    h = 0.5 * h * (1.0 + jax.lax.erf(h * 0.7071067811865476))
    y = jnp.dot(h.astype(w2_ref.dtype), w2_ref[...],
                preferred_element_type=jnp.float32)              # [M, 4*Co]
    y = y * scale_ref[...] + shift_ref[...]                      # BN (inference)
    o_ref[...] = jnp.maximum(y, 0.0).astype(o_ref.dtype)         # ReLU, bf16 out


def mlp_fwd(r2d, d2d, w1r, w1d, b1, w2, bn_scale, bn_shift, *,
            tile_m=1024, out_dtype=jnp.bfloat16):
    N, C = r2d.shape
    Hd2 = w1r.shape[1]
    Co4 = w2.shape[1]

    # bf16-friendly (16-aligned) row tiles; force >=2 grid steps when rows allow
    # so both v7x TensorCores get work.
    tile_m = max(16, min(tile_m, _round_up(N, 16)))
    if _round_up(N, tile_m) // tile_m < 2 and N > 16:
        tile_m = max(16, _round_up(pl.cdiv(N, 2), 16))
    Np = _round_up(N, tile_m)
    if Np != N:                                    # zero-padded tail rows (sliced off)
        r2d = jnp.pad(r2d, ((0, Np - N), (0, 0)))
        d2d = jnp.pad(d2d, ((0, Np - N), (0, 0)))

    isz = jnp.dtype(r2d.dtype).itemsize
    osz = jnp.dtype(out_dtype).itemsize
    est = (2 * tile_m * C * isz * 2                # 2 input tiles, double-buffered
           + tile_m * Co4 * osz * 2                # output tile, double-buffered
           + (2 * C * Hd2 + Hd2 * Co4) * 2         # resident bf16 weights
           + tile_m * Hd2 * 4                      # f32 GELU intermediate
           + (2 << 20))
    vmem_limit = int(min(48 << 20, max(16 << 20, 2 * est)))

    out = pl.pallas_call(
        _mlp_kernel,
        out_shape=jax.ShapeDtypeStruct((Np, Co4), out_dtype),
        grid=(Np // tile_m,),
        in_specs=[
            pl.BlockSpec((tile_m, C), lambda i: (i, 0)),
            pl.BlockSpec((tile_m, C), lambda i: (i, 0)),
            pl.BlockSpec((C, Hd2), lambda i: (0, 0)),
            pl.BlockSpec((C, Hd2), lambda i: (0, 0)),
            pl.BlockSpec((1, Hd2), lambda i: (0, 0)),
            pl.BlockSpec((Hd2, Co4), lambda i: (0, 0)),
            pl.BlockSpec((1, Co4), lambda i: (0, 0)),
            pl.BlockSpec((1, Co4), lambda i: (0, 0)),
        ],
        out_specs=pl.BlockSpec((tile_m, Co4), lambda i: (i, 0)),
        compiler_params=pltpu.CompilerParams(
            dimension_semantics=("parallel",),
            vmem_limit_bytes=vmem_limit),
    )(r2d, d2d, w1r, w1d, b1, w2, bn_scale, bn_shift)
    return out[:N] if Np != N else out


# ---------------------------------------------------------------------------
# Parameter init (deterministic, trunc_normal std=0.02 like _init_weights)
# ---------------------------------------------------------------------------
def init_params(key, in_features, hidden_features=None, ratio=16, enhance=True):
    hidden = hidden_features or in_features
    out_features = in_features // 4
    ks = jax.random.split(key, 8)

    def trunc(k, shape, std=0.02):
        return std * jax.random.truncated_normal(k, -2.0, 2.0, shape, jnp.float32)

    p = {"enhance": enhance, "out_features": out_features}
    if enhance:
        p["sa_w"] = trunc(ks[0], (7, 7))                        # 7x7, 1->1, no bias
        p["r_w1"] = trunc(ks[1], (in_features, in_features // ratio))
        p["r_w2"] = trunc(ks[2], (in_features // ratio, in_features))
        p["d_w1"] = trunc(ks[3], (in_features, in_features // ratio))
        p["d_w2"] = trunc(ks[4], (in_features // ratio, in_features))

    # fc1: Conv2d(2C, 2*hidden, 1, bias=True) as [2C, 2*hidden] matmul weight,
    # split into the r-half and d-half so the concat is fused into the kernel.
    fc1_w = trunc(ks[5], (2 * in_features, 2 * hidden))
    p["fc1_w_r"] = fc1_w[:in_features].astype(jnp.bfloat16)
    p["fc1_w_d"] = fc1_w[in_features:].astype(jnp.bfloat16)
    p["fc1_b"] = jnp.zeros((1, 2 * hidden), jnp.float32)

    # fc2: ConvTranspose2d(2*hidden, out, k=2, s=2, bias=False); torch weight
    # shape [in, out, 2, 2] -> rearranged to [in, (ki,kj,out)] for the matmul.
    w_deconv = 0.1 * jax.random.normal(ks[6], (2 * hidden, out_features, 2, 2),
                                       jnp.float32)
    p["fc2_w"] = jnp.transpose(w_deconv, (0, 2, 3, 1)).reshape(
        2 * hidden, 4 * out_features).astype(jnp.bfloat16)

    # BatchNorm2d(out) inference params: gamma=1, beta=0, mean=0, var=1, eps=1e-5
    gamma = jnp.ones((out_features,), jnp.float32)
    beta = jnp.zeros((out_features,), jnp.float32)
    rmean = jnp.zeros((out_features,), jnp.float32)
    rvar = jnp.ones((out_features,), jnp.float32)
    bn_scale = gamma / jnp.sqrt(rvar + 1e-5)
    bn_shift = beta - rmean * bn_scale
    p["bn_scale"] = jnp.tile(bn_scale, 4)[None, :]              # tiled over (ki,kj)
    p["bn_shift"] = jnp.tile(bn_shift, 4)[None, :]
    return p


# ---------------------------------------------------------------------------
# Full forward.  NHWC entry skips all layout transposes; the NCHW entry matches
# the PyTorch module's I/O convention (casts to bf16 during the transpose).
# ---------------------------------------------------------------------------
def ftrans_fusion_forward_nhwc(params, r_nhwc, d_nhwc):
    r = r_nhwc.astype(jnp.bfloat16)
    d = d_nhwc.astype(jnp.bfloat16)
    B, H, W, C = r.shape

    if params["enhance"]:
        r, d = fuse_enhance_fwd(r, d, params)

    N = B * H * W
    y2d = mlp_fwd(r.reshape(N, C), d.reshape(N, C),
                  params["fc1_w_r"], params["fc1_w_d"], params["fc1_b"],
                  params["fc2_w"], params["bn_scale"], params["bn_shift"])

    out_c = params["out_features"]
    y = y2d.reshape(B, H, W, 2, 2, out_c)                        # (b,i,j,ki,kj,c)
    y = jnp.transpose(y, (0, 1, 3, 2, 4, 5)).reshape(B, 2 * H, 2 * W, out_c)
    return y                                                     # NHWC, bf16


def ftrans_fusion_forward(params, rgb_nchw, x_nchw):
    r = jnp.transpose(rgb_nchw, (0, 2, 3, 1)).astype(jnp.bfloat16)   # NHWC bf16
    d = jnp.transpose(x_nchw, (0, 2, 3, 1)).astype(jnp.bfloat16)
    y = ftrans_fusion_forward_nhwc(params, r, d)
    return jnp.transpose(y, (0, 3, 1, 2))                            # [B, Co, 2H, 2W]


# ---------------------------------------------------------------------------
# Pure-JAX reference (same precision policy) for correctness verification.
# ---------------------------------------------------------------------------
def ftrans_fusion_reference(params, rgb_nchw, x_nchw):
    r = jnp.transpose(rgb_nchw, (0, 2, 3, 1)).astype(jnp.bfloat16)
    d = jnp.transpose(x_nchw, (0, 2, 3, 1)).astype(jnp.bfloat16)
    B, H, W, C = r.shape
    if params["enhance"]:
        r32 = r.astype(jnp.float32)
        d32 = d.astype(jnp.float32)
        w = params["sa_w"]
        m = jnp.max(r32 * d32, axis=-1)                              # [B, H, W]
        mp = jnp.pad(m, ((0, 0), (3, 3), (3, 3)))
        acc = jnp.zeros((B, H, W), jnp.float32)
        for a in range(7):
            for b in range(7):
                acc = acc + w[a, b] * mp[:, a:a + H, b:b + W]
        sa = jax.nn.sigmoid(acc)[..., None]

        def chan_attn(x_f, w1, w2):
            pooled = jnp.max(x_f, axis=(1, 2))                       # [B, C]
            return jax.nn.sigmoid(jnp.maximum(pooled @ w1, 0.0) @ w2)

        r_ca = chan_attn(r32 * sa, params["r_w1"], params["r_w2"])
        d_ca = chan_attn(d32 * sa, params["d_w1"], params["d_w2"])
        r = (r32 * r_ca[:, None, None, :]).astype(jnp.bfloat16)
        d = (d32 * d_ca[:, None, None, :]).astype(jnp.bfloat16)

    x2 = jnp.concatenate([r, d], axis=-1).reshape(B * H * W, 2 * C)
    w1 = jnp.concatenate([params["fc1_w_r"], params["fc1_w_d"]], axis=0)
    h = jnp.dot(x2, w1, preferred_element_type=jnp.float32) + params["fc1_b"]
    h = 0.5 * h * (1.0 + jax.lax.erf(h * 0.7071067811865476))
    y = jnp.dot(h.astype(jnp.bfloat16), params["fc2_w"],
                preferred_element_type=jnp.float32)
    y = jnp.maximum(y * params["bn_scale"] + params["bn_shift"], 0.0)
    out_c = params["out_features"]
    y = y.reshape(B, H, W, 2, 2, out_c).astype(jnp.bfloat16)
    y = jnp.transpose(y, (0, 1, 3, 2, 4, 5)).reshape(B, 2 * H, 2 * W, out_c)
    return jnp.transpose(y, (0, 3, 1, 2))


if __name__ == "__main__":
    key = jax.random.PRNGKey(0)
    k1, k2, k3 = jax.random.split(key, 3)
    B, C, H, W = 2, 32, 8, 8                      # C=32 so C//ratio=2, out=C//4=8
    rgb = jax.random.normal(k1, (B, C, H, W), jnp.float32)
    x = jax.random.normal(k2, (B, C, H, W), jnp.float32)
    params = init_params(k3, in_features=C, enhance=True)

    out = jax.block_until_ready(ftrans_fusion_forward(params, rgb, x))
    assert out.shape == (B, C // 4, 2 * H, 2 * W), out.shape
    assert out.dtype == jnp.bfloat16, out.dtype

    ref = jax.block_until_ready(ftrans_fusion_reference(params, rgb, x))
    max_err = float(jnp.max(jnp.abs(out.astype(jnp.float32) - ref.astype(jnp.float32))))
    assert max_err < 2e-2, f"max |out - ref| = {max_err}"
    print("KERNEL_OK")
</pallas_src>

<mosaic_0001>
module attributes {stable_mosaic.version = 11 : i64} {
  func.func @_fuse_enhance_kernel(%arg0: i32, %arg1: memref<2x8x8x32xbf16, #tpu.memory_space<vmem>>, %arg2: memref<2x8x8x32xbf16, #tpu.memory_space<vmem>>, %arg3: memref<56x8xf32, #tpu.memory_space<vmem>>, %arg4: memref<32x2xf32, #tpu.memory_space<vmem>>, %arg5: memref<2x32xf32, #tpu.memory_space<vmem>>, %arg6: memref<32x2xf32, #tpu.memory_space<vmem>>, %arg7: memref<2x32xf32, #tpu.memory_space<vmem>>, %arg8: memref<2x8x8x32xbf16, #tpu.memory_space<vmem>>, %arg9: memref<2x8x8x32xbf16, #tpu.memory_space<vmem>>) attributes {dimension_semantics = [#tpu.dimension_semantics<parallel>], iteration_bounds = array<i64: 1>, scalar_prefetch = 0 : i64, scratch_operands = 0 : i64, tpu.core_type = #tpu.core_type<tc>, window_params = [{transform_indices = @transform_0, window_bounds = array<i64: 2, 8, 8, 32>}, {transform_indices = @transform_1, window_bounds = array<i64: 2, 8, 8, 32>}, {pipeline_mode = #tpu.pipeline_mode<synchronous>, transform_indices = @transform_2, window_bounds = array<i64: 56, 8>}, {pipeline_mode = #tpu.pipeline_mode<synchronous>, transform_indices = @transform_3, window_bounds = array<i64: 32, 2>}, {pipeline_mode = #tpu.pipeline_mode<synchronous>, transform_indices = @transform_4, window_bounds = array<i64: 2, 32>}, {pipeline_mode = #tpu.pipeline_mode<synchronous>, transform_indices = @transform_5, window_bounds = array<i64: 32, 2>}, {pipeline_mode = #tpu.pipeline_mode<synchronous>, transform_indices = @transform_6, window_bounds = array<i64: 2, 32>}, {transform_indices = @transform_7, window_bounds = array<i64: 2, 8, 8, 32>}, {transform_indices = @transform_8, window_bounds = array<i64: 2, 8, 8, 32>}]} {
    %c0 = arith.constant 0 : index
    %c0_0 = arith.constant 0 : index
    %0 = vector.load %arg3[%c0, %c0_0] : memref<56x8xf32, #tpu.memory_space<vmem>>, vector<56x8xf32>
    %c0_1 = arith.constant 0 : index
    %c0_2 = arith.constant 0 : index
    %1 = vector.load %arg4[%c0_1, %c0_2] : memref<32x2xf32, #tpu.memory_space<vmem>>, vector<32x2xf32>
    %c0_3 = arith.constant 0 : index
    %c0_4 = arith.constant 0 : index
    %2 = vector.load %arg5[%c0_3, %c0_4] : memref<2x32xf32, #tpu.memory_space<vmem>>, vector<2x32xf32>
    %c0_5 = arith.constant 0 : index
    %c0_6 = arith.constant 0 : index
    %3 = vector.load %arg6[%c0_5, %c0_6] : memref<32x2xf32, #tpu.memory_space<vmem>>, vector<32x2xf32>
    %c0_7 = arith.constant 0 : index
    %c0_8 = arith.constant 0 : index
    %4 = vector.load %arg7[%c0_7, %c0_8] : memref<2x32xf32, #tpu.memory_space<vmem>>, vector<2x32xf32>
    %5 = tpu.iota {dimensions = array<i32: 0>} : vector<8x8xi32>
    %c0_9 = arith.constant 0 : index
    %c0_10 = arith.constant 0 : index
    %c0_11 = arith.constant 0 : index
    %c0_12 = arith.constant 0 : index
    %6 = vector.load %arg1[%c0_9, %c0_10, %c0_11, %c0_12] : memref<2x8x8x32xbf16, #tpu.memory_space<vmem>>, vector<1x8x8x32xbf16>
    %7 = vector.shape_cast %6 : vector<1x8x8x32xbf16> to vector<8x8x32xbf16>
    %8 = arith.extf %7 : vector<8x8x32xbf16> to vector<8x8x32xf32>
    %c0_13 = arith.constant 0 : index
    %c0_14 = arith.constant 0 : index
    %c0_15 = arith.constant 0 : index
    %c0_16 = arith.constant 0 : index
    %9 = vector.load %arg2[%c0_13, %c0_14, %c0_15, %c0_16] : memref<2x8x8x32xbf16, #tpu.memory_space<vmem>>, vector<1x8x8x32xbf16>
    %10 = vector.shape_cast %9 : vector<1x8x8x32xbf16> to vector<8x8x32xbf16>
    %11 = arith.extf %10 : vector<8x8x32xbf16> to vector<8x8x32xf32>
    %12 = arith.mulf %8, %11 : vector<8x8x32xf32>
    %cst = arith.constant dense<0xFF800000> : vector<8x8xf32>
    %13 = vector.multi_reduction <maximumf>, %12, %cst [2] : vector<8x8x32xf32> to vector<8x8xf32>
    %c3_i32 = arith.constant 3 : i32
    %14 = tpu.dynamic_rotate %13 by %c3_i32 dim 0 : vector<8x8xf32>, i32 -> vector<8x8xf32>
    %c3_i32_17 = arith.constant 3 : i32
    %15 = vector.broadcast %c3_i32_17 : i32 to vector<8x8xi32>
    %16 = arith.cmpi sge, %5, %15 : vector<8x8xi32>
    %c11_i32 = arith.constant 11 : i32
    %17 = vector.broadcast %c11_i32 : i32 to vector<8x8xi32>
    %18 = arith.cmpi slt, %5, %17 : vector<8x8xi32>
    %19 = arith.andi %16, %18 : vector<8x8xi1>
    %cst_18 = arith.constant 0.000000e+00 : f32
    %20 = vector.broadcast %cst_18 : f32 to vector<8x8xf32>
    %21 = arith.select %19, %14, %20 : vector<8x8xi1>, vector<8x8xf32>
    %c2_i32 = arith.constant 2 : i32
    %22 = tpu.dynamic_rotate %13 by %c2_i32 dim 0 : vector<8x8xf32>, i32 -> vector<8x8xf32>
    %c2_i32_19 = arith.constant 2 : i32
    %23 = vector.broadcast %c2_i32_19 : i32 to vector<8x8xi32>
    %24 = arith.cmpi sge, %5, %23 : vector<8x8xi32>
    %c10_i32 = arith.constant 10 : i32
    %25 = vector.broadcast %c10_i32 : i32 to vector<8x8xi32>
    %26 = arith.cmpi slt, %5, %25 : vector<8x8xi32>
    %27 = arith.andi %24, %26 : vector<8x8xi1>
    %cst_20 = arith.constant 0.000000e+00 : f32
    %28 = vector.broadcast %cst_20 : f32 to vector<8x8xf32>
    %29 = arith.select %27, %22, %28 : vector<8x8xi1>, vector<8x8xf32>
    %c1_i32 = arith.constant 1 : i32
    %30 = tpu.dynamic_rotate %13 by %c1_i32 dim 0 : vector<8x8xf32>, i32 -> vector<8x8xf32>
    %c1_i32_21 = arith.constant 1 : i32
    %31 = vector.broadcast %c1_i32_21 : i32 to vector<8x8xi32>
    %32 = arith.cmpi sge, %5, %31 : vector<8x8xi32>
    %c9_i32 = arith.constant 9 : i32
    %33 = vector.broadcast %c9_i32 : i32 to vector<8x8xi32>
    %34 = arith.cmpi slt, %5, %33 : vector<8x8xi32>
    %35 = arith.andi %32, %34 : vector<8x8xi1>
    %cst_22 = arith.constant 0.000000e+00 : f32
    %36 = vector.broadcast %cst_22 : f32 to vector<8x8xf32>
    %37 = arith.select %35, %30, %36 : vector<8x8xi1>, vector<8x8xf32>
    %c7_i32 = arith.constant 7 : i32
    %38 = tpu.dynamic_rotate %13 by %c7_i32 dim 0 : vector<8x8xf32>, i32 -> vector<8x8xf32>
    %c-1_i32 = arith.constant -1 : i32
    %39 = vector.broadcast %c-1_i32 : i32 to vector<8x8xi32>
    %40 = arith.cmpi sge, %5, %39 : vector<8x8xi32>
    %c7_i32_23 = arith.constant 7 : i32
    %41 = vector.broadcast %c7_i32_23 : i32 to vector<8x8xi32>
    %42 = arith.cmpi slt, %5, %41 : vector<8x8xi32>
    %43 = arith.andi %40, %42 : vector<8x8xi1>
    %cst_24 = arith.constant 0.000000e+00 : f32
    %44 = vector.broadcast %cst_24 : f32 to vector<8x8xf32>
    %45 = arith.select %43, %38, %44 : vector<8x8xi1>, vector<8x8xf32>
    %c6_i32 = arith.constant 6 : i32
    %46 = tpu.dynamic_rotate %13 by %c6_i32 dim 0 : vector<8x8xf32>, i32 -> vector<8x8xf32>
    %c-2_i32 = arith.constant -2 : i32
    %47 = vector.broadcast %c-2_i32 : i32 to vector<8x8xi32>
    %48 = arith.cmpi sge, %5, %47 : vector<8x8xi32>
    %c6_i32_25 = arith.constant 6 : i32
    %49 = vector.broadcast %c6_i32_25 : i32 to vector<8x8xi32>
    %50 = arith.cmpi slt, %5, %49 : vector<8x8xi32>
    %51 = arith.andi %48, %50 : vector<8x8xi1>
    %cst_26 = arith.constant 0.000000e+00 : f32
    %52 = vector.broadcast %cst_26 : f32 to vector<8x8xf32>
    %53 = arith.select %51, %46, %52 : vector<8x8xi1>, vector<8x8xf32>
    %c5_i32 = arith.constant 5 : i32
    %54 = tpu.dynamic_rotate %13 by %c5_i32 dim 0 : vector<8x8xf32>, i32 -> vector<8x8xf32>
    %c-3_i32 = arith.constant -3 : i32
    %55 = vector.broadcast %c-3_i32 : i32 to vector<8x8xi32>
    %56 = arith.cmpi sge, %5, %55 : vector<8x8xi32>
    %c5_i32_27 = arith.constant 5 : i32
    %57 = vector.broadcast %c5_i32_27 : i32 to vector<8x8xi32>
    %58 = arith.cmpi slt, %5, %57 : vector<8x8xi32>
    %59 = arith.andi %56, %58 : vector<8x8xi1>
    %cst_28 = arith.constant 0.000000e+00 : f32
    %60 = vector.broadcast %cst_28 : f32 to vector<8x8xf32>
    %61 = arith.select %59, %54, %60 : vector<8x8xi1>, vector<8x8xf32>
    %62 = tpu.concatenate %21, %29, %37, %13, %45, %53, %61 in 1 : vector<8x8xf32>, vector<8x8xf32>, vector<8x8xf32>, vector<8x8xf32>, vector<8x8xf32>, vector<8x8xf32>, vector<8x8xf32> -> vector<8x56xf32>
    %cst_29 = arith.constant dense<0.000000e+00> : vector<8x8xf32>
    %63 = tpu.matmul %62, %0, %cst_29 {dimension_numbers = #tpu.dot_dimension_numbers<[1], [0], [0], [1], [0, 0, 1, 1], [], []>} : vector<8x56xf32>, vector<56x8xf32>, vector<8x8xf32> -> vector<8x8xf32>
    %64 = arith.negf %63 : vector<8x8xf32>
    %65 = math.exp %64 : vector<8x8xf32>
    %cst_30 = arith.constant 1.000000e+00 : f32
    %66 = vector.broadcast %cst_30 : f32 to vector<8x8xf32>
    %67 = arith.addf %66, %65 : vector<8x8xf32>
    %68 = arith.divf %66, %67 : vector<8x8xf32>
    %69 = vector.shape_cast %68 : vector<8x8xf32> to vector<8x8x1xf32>
    %70 = vector.broadcast %69 : vector<8x8x1xf32> to vector<8x8x32xf32>
    %71 = arith.mulf %8, %70 : vector<8x8x32xf32>
    %cst_31 = arith.constant dense<0xFF800000> : vector<8x32xf32>
    %72 = vector.multi_reduction <maximumf>, %71, %cst_31 [0] : vector<8x8x32xf32> to vector<8x32xf32>
    %cst_32 = arith.constant dense<0xFF800000> : vector<32xf32>
    %73 = vector.multi_reduction <maximumf>, %72, %cst_32 [0] : vector<8x32xf32> to vector<32xf32>
    %74 = vector.shape_cast %73 : vector<32xf32> to vector<1x32xf32>
    %75 = vector.broadcast %69 : vector<8x8x1xf32> to vector<8x8x32xf32>
    %76 = arith.mulf %11, %75 : vector<8x8x32xf32>
    %cst_33 = arith.constant dense<0xFF800000> : vector<8x32xf32>
    %77 = vector.multi_reduction <maximumf>, %76, %cst_33 [0] : vector<8x8x32xf32> to vector<8x32xf32>
    %cst_34 = arith.constant dense<0xFF800000> : vector<32xf32>
    %78 = vector.multi_reduction <maximumf>, %77, %cst_34 [0] : vector<8x32xf32> to vector<32xf32>
    %79 = vector.shape_cast %78 : vector<32xf32> to vector<1x32xf32>
    %c1 = arith.constant 1 : index
    %c0_35 = arith.constant 0 : index
    %c0_36 = arith.constant 0 : index
    %c0_37 = arith.constant 0 : index
    %80 = vector.load %arg1[%c1, %c0_35, %c0_36, %c0_37] : memref<2x8x8x32xbf16, #tpu.memory_space<vmem>>, vector<1x8x8x32xbf16>
    %81 = vector.shape_cast %80 : vector<1x8x8x32xbf16> to vector<8x8x32xbf16>
    %82 = arith.extf %81 : vector<8x8x32xbf16> to vector<8x8x32xf32>
    %c1_38 = arith.constant 1 : index
    %c0_39 = arith.constant 0 : index
    %c0_40 = arith.constant 0 : index
    %c0_41 = arith.constant 0 : index
    %83 = vector.load %arg2[%c1_38, %c0_39, %c0_40, %c0_41] : memref<2x8x8x32xbf16, #tpu.memory_space<vmem>>, vector<1x8x8x32xbf16>
    %84 = vector.shape_cast %83 : vector<1x8x8x32xbf16> to vector<8x8x32xbf16>
    %85 = arith.extf %84 : vector<8x8x32xbf16> to vector<8x8x32xf32>
    %86 = arith.mulf %82, %85 : vector<8x8x32xf32>
    %cst_42 = arith.constant dense<0xFF800000> : vector<8x8xf32>
    %87 = vector.multi_reduction <maximumf>, %86, %cst_42 [2] : vector<8x8x32xf32> to vector<8x8xf32>
    %c3_i32_43 = arith.constant 3 : i32
    %88 = tpu.dynamic_rotate %87 by %c3_i32_43 dim 0 : vector<8x8xf32>, i32 -> vector<8x8xf32>
    %c3_i32_44 = arith.constant 3 : i32
    %89 = vector.broadcast %c3_i32_44 : i32 to vector<8x8xi32>
    %90 = arith.cmpi sge, %5, %89 : vector<8x8xi32>
    %c11_i32_45 = arith.constant 11 : i32
    %91 = vector.broadcast %c11_i32_45 : i32 to vector<8x8xi32>
    %92 = arith.cmpi slt, %5, %91 : vector<8x8xi32>
    %93 = arith.andi %90, %92 : vector<8x8xi1>
    %cst_46 = arith.constant 0.000000e+00 : f32
    %94 = vector.broadcast %cst_46 : f32 to vector<8x8xf32>
    %95 = arith.select %93, %88, %94 : vector<8x8xi1>, vector<8x8xf32>
    %c2_i32_47 = arith.constant 2 : i32
    %96 = tpu.dynamic_rotate %87 by %c2_i32_47 dim 0 : vector<8x8xf32>, i32 -> vector<8x8xf32>
    %c2_i32_48 = arith.constant 2 : i32
    %97 = vector.broadcast %c2_i32_48 : i32 to vector<8x8xi32>
    %98 = arith.cmpi sge, %5, %97 : vector<8x8xi32>
    %c10_i32_49 = arith.constant 10 : i32
    %99 = vector.broadcast %c10_i32_49 : i32 to vector<8x8xi32>
    %100 = arith.cmpi slt, %5, %99 : vector<8x8xi32>
    %101 = arith.andi %98, %100 : vector<8x8xi1>
    %cst_50 = arith.constant 0.000000e+00 : f32
    %102 = vector.broadcast %cst_50 : f32 to vector<8x8xf32>
    %103 = arith.select %101, %96, %102 : vector<8x8xi1>, vector<8x8xf32>
    %c1_i32_51 = arith.constant 1 : i32
    %104 = tpu.dynamic_rotate %87 by %c1_i32_51 dim 0 : vector<8x8xf32>, i32 -> vector<8x8xf32>
    %c1_i32_52 = arith.constant 1 : i32
    %105 = vector.broadcast %c1_i32_52 : i32 to vector<8x8xi32>
    %106 = arith.cmpi sge, %5, %105 : vector<8x8xi32>
    %c9_i32_53 = arith.constant 9 : i32
    %107 = vector.broadcast %c9_i32_53 : i32 to vector<8x8xi32>
    %108 = arith.cmpi slt, %5, %107 : vector<8x8xi32>
    %109 = arith.andi %106, %108 : vector<8x8xi1>
    %cst_54 = arith.constant 0.000000e+00 : f32
    %110 = vector.broadcast %cst_54 : f32 to vector<8x8xf32>
    %111 = arith.select %109, %104, %110 : vector<8x8xi1>, vector<8x8xf32>
    %c7_i32_55 = arith.constant 7 : i32
    %112 = tpu.dynamic_rotate %87 by %c7_i32_55 dim 0 : vector<8x8xf32>, i32 -> vector<8x8xf32>
    %c-1_i32_56 = arith.constant -1 : i32
    %113 = vector.broadcast %c-1_i32_56 : i32 to vector<8x8xi32>
    %114 = arith.cmpi sge, %5, %113 : vector<8x8xi32>
    %c7_i32_57 = arith.constant 7 : i32
    %115 = vector.broadcast %c7_i32_57 : i32 to vector<8x8xi32>
    %116 = arith.cmpi slt, %5, %115 : vector<8x8xi32>
    %117 = arith.andi %114, %116 : vector<8x8xi1>
    %cst_58 = arith.constant 0.000000e+00 : f32
    %118 = vector.broadcast %cst_58 : f32 to vector<8x8xf32>
    %119 = arith.select %117, %112, %118 : vector<8x8xi1>, vector<8x8xf32>
    %c6_i32_59 = arith.constant 6 : i32
    %120 = tpu.dynamic_rotate %87 by %c6_i32_59 dim 0 : vector<8x8xf32>, i32 -> vector<8x8xf32>
    %c-2_i32_60 = arith.constant -2 : i32
    %121 = vector.broadcast %c-2_i32_60 : i32 to vector<8x8xi32>
    %122 = arith.cmpi sge, %5, %121 : vector<8x8xi32>
    %c6_i32_61 = arith.constant 6 : i32
    %123 = vector.broadcast %c6_i32_61 : i32 to vector<8x8xi32>
    %124 = arith.cmpi slt, %5, %123 : vector<8x8xi32>
    %125 = arith.andi %122, %124 : vector<8x8xi1>
    %cst_62 = arith.constant 0.000000e+00 : f32
    %126 = vector.broadcast %cst_62 : f32 to vector<8x8xf32>
    %127 = arith.select %125, %120, %126 : vector<8x8xi1>, vector<8x8xf32>
    %c5_i32_63 = arith.constant 5 : i32
    %128 = tpu.dynamic_rotate %87 by %c5_i32_63 dim 0 : vector<8x8xf32>, i32 -> vector<8x8xf32>
    %c-3_i32_64 = arith.constant -3 : i32
    %129 = vector.broadcast %c-3_i32_64 : i32 to vector<8x8xi32>
    %130 = arith.cmpi sge, %5, %129 : vector<8x8xi32>
    %c5_i32_65 = arith.constant 5 : i32
    %131 = vector.broadcast %c5_i32_65 : i32 to vector<8x8xi32>
    %132 = arith.cmpi slt, %5, %131 : vector<8x8xi32>
    %133 = arith.andi %130, %132 : vector<8x8xi1>
    %cst_66 = arith.constant 0.000000e+00 : f32
    %134 = vector.broadcast %cst_66 : f32 to vector<8x8xf32>
    %135 = arith.select %133, %128, %134 : vector<8x8xi1>, vector<8x8xf32>
    %136 = tpu.concatenate %95, %103, %111, %87, %119, %127, %135 in 1 : vector<8x8xf32>, vector<8x8xf32>, vector<8x8xf32>, vector<8x8xf32>, vector<8x8xf32>, vector<8x8xf32>, vector<8x8xf32> -> vector<8x56xf32>
    %cst_67 = arith.constant dense<0.000000e+00> : vector<8x8xf32>
    %137 = tpu.matmul %136, %0, %cst_67 {dimension_numbers = #tpu.dot_dimension_numbers<[1], [0], [0], [1], [0, 0, 1, 1], [], []>} : vector<8x56xf32>, vector<56x8xf32>, vector<8x8xf32> -> vector<8x8xf32>
    %138 = arith.negf %137 : vector<8x8xf32>
    %139 = math.exp %138 : vector<8x8xf32>
    %cst_68 = arith.constant 1.000000e+00 : f32
    %140 = vector.broadcast %cst_68 : f32 to vector<8x8xf32>
    %141 = arith.addf %140, %139 : vector<8x8xf32>
    %142 = arith.divf %140, %141 : vector<8x8xf32>
    %143 = vector.shape_cast %142 : vector<8x8xf32> to vector<8x8x1xf32>
    %144 = vector.broadcast %143 : vector<8x8x1xf32> to vector<8x8x32xf32>
    %145 = arith.mulf %82, %144 : vector<8x8x32xf32>
    %cst_69 = arith.constant dense<0xFF800000> : vector<8x32xf32>
    %146 = vector.multi_reduction <maximumf>, %145, %cst_69 [0] : vector<8x8x32xf32> to vector<8x32xf32>
    %cst_70 = arith.constant dense<0xFF800000> : vector<32xf32>
    %147 = vector.multi_reduction <maximumf>, %146, %cst_70 [0] : vector<8x32xf32> to vector<32xf32>
    %148 = vector.shape_cast %147 : vector<32xf32> to vector<1x32xf32>
    %149 = vector.broadcast %143 : vector<8x8x1xf32> to vector<8x8x32xf32>
    %150 = arith.mulf %85, %149 : vector<8x8x32xf32>
    %cst_71 = arith.constant dense<0xFF800000> : vector<8x32xf32>
    %151 = vector.multi_reduction <maximumf>, %150, %cst_71 [0] : vector<8x8x32xf32> to vector<8x32xf32>
    %cst_72 = arith.constant dense<0xFF800000> : vector<32xf32>
    %152 = vector.multi_reduction <maximumf>, %151, %cst_72 [0] : vector<8x32xf32> to vector<32xf32>
    %153 = vector.shape_cast %152 : vector<32xf32> to vector<1x32xf32>
    %154 = tpu.concatenate %74, %148 in 0 : vector<1x32xf32>, vector<1x32xf32> -> vector<2x32xf32>
    %155 = tpu.concatenate %79, %153 in 0 : vector<1x32xf32>, vector<1x32xf32> -> vector<2x32xf32>
    %cst_73 = arith.constant dense<0.000000e+00> : vector<2x2xf32>
    %156 = tpu.matmul %154, %1, %cst_73 {dimension_numbers = #tpu.dot_dimension_numbers<[1], [0], [0], [1], [0, 0, 1, 1], [], []>} : vector<2x32xf32>, vector<32x2xf32>, vector<2x2xf32> -> vector<2x2xf32>
    %cst_74 = arith.constant 0.000000e+00 : f32
    %157 = vector.broadcast %cst_74 : f32 to vector<2x2xf32>
    %158 = arith.maximumf %156, %157 : vector<2x2xf32>
    %cst_75 = arith.constant dense<0.000000e+00> : vector<2x32xf32>
    %159 = tpu.matmul %158, %2, %cst_75 {dimension_numbers = #tpu.dot_dimension_numbers<[1], [0], [0], [1], [0, 0, 1, 1], [], []>} : vector<2x2xf32>, vector<2x32xf32>, vector<2x32xf32> -> vector<2x32xf32>
    %160 = arith.negf %159 : vector<2x32xf32>
    %161 = math.exp %160 : vector<2x32xf32>
    %cst_76 = arith.constant 1.000000e+00 : f32
    %162 = vector.broadcast %cst_76 : f32 to vector<2x32xf32>
    %163 = arith.addf %162, %161 : vector<2x32xf32>
    %164 = arith.divf %162, %163 : vector<2x32xf32>
    %cst_77 = arith.constant dense<0.000000e+00> : vector<2x2xf32>
    %165 = tpu.matmul %155, %3, %cst_77 {dimension_numbers = #tpu.dot_dimension_numbers<[1], [0], [0], [1], [0, 0, 1, 1], [], []>} : vector<2x32xf32>, vector<32x2xf32>, vector<2x2xf32> -> vector<2x2xf32>
    %cst_78 = arith.constant 0.000000e+00 : f32
    %166 = vector.broadcast %cst_78 : f32 to vector<2x2xf32>
    %167 = arith.maximumf %165, %166 : vector<2x2xf32>
    %cst_79 = arith.constant dense<0.000000e+00> : vector<2x32xf32>
    %168 = tpu.matmul %167, %4, %cst_79 {dimension_numbers = #tpu.dot_dimension_numbers<[1], [0], [0], [1], [0, 0, 1, 1], [], []>} : vector<2x2xf32>, vector<2x32xf32>, vector<2x32xf32> -> vector<2x32xf32>
    %169 = arith.negf %168 : vector<2x32xf32>
    %170 = math.exp %169 : vector<2x32xf32>
    %cst_80 = arith.constant 1.000000e+00 : f32
    %171 = vector.broadcast %cst_80 : f32 to vector<2x32xf32>
    %172 = arith.addf %171, %170 : vector<2x32xf32>
    %173 = arith.divf %171, %172 : vector<2x32xf32>
    %c0_81 = arith.constant 0 : index
    %c0_82 = arith.constant 0 : index
    %c0_83 = arith.constant 0 : index
    %c0_84 = arith.constant 0 : index
    %174 = vector.load %arg1[%c0_81, %c0_82, %c0_83, %c0_84] : memref<2x8x8x32xbf16, #tpu.memory_space<vmem>>, vector<1x8x8x32xbf16>
    %175 = vector.shape_cast %174 : vector<1x8x8x32xbf16> to vector<8x8x32xbf16>
    %176 = arith.extf %175 : vector<8x8x32xbf16> to vector<8x8x32xf32>
    %177 = vector.extract_strided_slice %164 {offsets = [0, 0], sizes = [1, 32], strides = [1, 1]} : vector<2x32xf32> to vector<1x32xf32>
    %178 = vector.shape_cast %177 : vector<1x32xf32> to vector<1x1x32xf32>
    %179 = vector.broadcast %178 : vector<1x1x32xf32> to vector<8x8x32xf32>
    %180 = arith.mulf %176, %179 : vector<8x8x32xf32>
    %181 = arith.truncf %180 : vector<8x8x32xf32> to vector<8x8x32xbf16>
    %c0_85 = arith.constant 0 : index
    %c0_86 = arith.constant 0 : index
    %c0_87 = arith.constant 0 : index
    %c0_88 = arith.constant 0 : index
    %182 = vector.load %arg8[%c0_85, %c0_86, %c0_87, %c0_88] : memref<2x8x8x32xbf16, #tpu.memory_space<vmem>>, vector<1x8x8x32xbf16>
    %183 = vector.shape_cast %182 : vector<1x8x8x32xbf16> to vector<8x8x32xbf16>
    %184 = vector.shape_cast %181 : vector<8x8x32xbf16> to vector<1x8x8x32xbf16>
    tpu.vector_store %arg8[%c0_85, %c0_86, %c0_87, %c0_88], %184 {strides = array<i32>} : memref<2x8x8x32xbf16, #tpu.memory_space<vmem>>, vector<1x8x8x32xbf16>,
    %c0_89 = arith.constant 0 : index
    %c0_90 = arith.constant 0 : index
    %c0_91 = arith.constant 0 : index
    %c0_92 = arith.constant 0 : index
    %185 = vector.load %arg2[%c0_89, %c0_90, %c0_91, %c0_92] : memref<2x8x8x32xbf16, #tpu.memory_space<vmem>>, vector<1x8x8x32xbf16>
    %186 = vector.shape_cast %185 : vector<1x8x8x32xbf16> to vector<8x8x32xbf16>
    %187 = arith.extf %186 : vector<8x8x32xbf16> to vector<8x8x32xf32>
    %188 = vector.extract_strided_slice %173 {offsets = [0, 0], sizes = [1, 32], strides = [1, 1]} : vector<2x32xf32> to vector<1x32xf32>
    %189 = vector.shape_cast %188 : vector<1x32xf32> to vector<1x1x32xf32>
    %190 = vector.broadcast %189 : vector<1x1x32xf32> to vector<8x8x32xf32>
    %191 = arith.mulf %187, %190 : vector<8x8x32xf32>
    %192 = arith.truncf %191 : vector<8x8x32xf32> to vector<8x8x32xbf16>
    %c0_93 = arith.constant 0 : index
    %c0_94 = arith.constant 0 : index
    %c0_95 = arith.constant 0 : index
    %c0_96 = arith.constant 0 : index
    %193 = vector.load %arg9[%c0_93, %c0_94, %c0_95, %c0_96] : memref<2x8x8x32xbf16, #tpu.memory_space<vmem>>, vector<1x8x8x32xbf16>
    %194 = vector.shape_cast %193 : vector<1x8x8x32xbf16> to vector<8x8x32xbf16>
    %195 = vector.shape_cast %192 : vector<8x8x32xbf16> to vector<1x8x8x32xbf16>
    tpu.vector_store %arg9[%c0_93, %c0_94, %c0_95, %c0_96], %195 {strides = array<i32>} : memref<2x8x8x32xbf16, #tpu.memory_space<vmem>>, vector<1x8x8x32xbf16>,
    %c1_97 = arith.constant 1 : index
    %c0_98 = arith.constant 0 : index
    %c0_99 = arith.constant 0 : index
    %c0_100 = arith.constant 0 : index
    %196 = vector.load %arg1[%c1_97, %c0_98, %c0_99, %c0_100] : memref<2x8x8x32xbf16, #tpu.memory_space<vmem>>, vector<1x8x8x32xbf16>
    %197 = vector.shape_cast %196 : vector<1x8x8x32xbf16> to vector<8x8x32xbf16>
    %198 = arith.extf %197 : vector<8x8x32xbf16> to vector<8x8x32xf32>
    %199 = vector.extract_strided_slice %164 {offsets = [1, 0], sizes = [1, 32], strides = [1, 1]} : vector<2x32xf32> to vector<1x32xf32>
    %200 = vector.shape_cast %199 : vector<1x32xf32> to vector<1x1x32xf32>
    %201 = vector.broadcast %200 : vector<1x1x32xf32> to vector<8x8x32xf32>
    %202 = arith.mulf %198, %201 : vector<8x8x32xf32>
    %203 = arith.truncf %202 : vector<8x8x32xf32> to vector<8x8x32xbf16>
    %c1_101 = arith.constant 1 : index
    %c0_102 = arith.constant 0 : index
    %c0_103 = arith.constant 0 : index
    %c0_104 = arith.constant 0 : index
    %204 = vector.load %arg8[%c1_101, %c0_102, %c0_103, %c0_104] : memref<2x8x8x32xbf16, #tpu.memory_space<vmem>>, vector<1x8x8x32xbf16>
    %205 = vector.shape_cast %204 : vector<1x8x8x32xbf16> to vector<8x8x32xbf16>
    %206 = vector.shape_cast %203 : vector<8x8x32xbf16> to vector<1x8x8x32xbf16>
    tpu.vector_store %arg8[%c1_101, %c0_102, %c0_103, %c0_104], %206 {strides = array<i32>} : memref<2x8x8x32xbf16, #tpu.memory_space<vmem>>, vector<1x8x8x32xbf16>,
    %c1_105 = arith.constant 1 : index
    %c0_106 = arith.constant 0 : index
    %c0_107 = arith.constant 0 : index
    %c0_108 = arith.constant 0 : index
    %207 = vector.load %arg2[%c1_105, %c0_106, %c0_107, %c0_108] : memref<2x8x8x32xbf16, #tpu.memory_space<vmem>>, vector<1x8x8x32xbf16>
    %208 = vector.shape_cast %207 : vector<1x8x8x32xbf16> to vector<8x8x32xbf16>
    %209 = arith.extf %208 : vector<8x8x32xbf16> to vector<8x8x32xf32>
    %210 = vector.extract_strided_slice %173 {offsets = [1, 0], sizes = [1, 32], strides = [1, 1]} : vector<2x32xf32> to vector<1x32xf32>
    %211 = vector.shape_cast %210 : vector<1x32xf32> to vector<1x1x32xf32>
    %212 = vector.broadcast %211 : vector<1x1x32xf32> to vector<8x8x32xf32>
    %213 = arith.mulf %209, %212 : vector<8x8x32xf32>
    %214 = arith.truncf %213 : vector<8x8x32xf32> to vector<8x8x32xbf16>
    %c1_109 = arith.constant 1 : index
    %c0_110 = arith.constant 0 : index
    %c0_111 = arith.constant 0 : index
    %c0_112 = arith.constant 0 : index
    %215 = vector.load %arg9[%c1_109, %c0_110, %c0_111, %c0_112] : memref<2x8x8x32xbf16, #tpu.memory_space<vmem>>, vector<1x8x8x32xbf16>
    %216 = vector.shape_cast %215 : vector<1x8x8x32xbf16> to vector<8x8x32xbf16>
    %217 = vector.shape_cast %214 : vector<8x8x32xbf16> to vector<1x8x8x32xbf16>
    tpu.vector_store %arg9[%c1_109, %c0_110, %c0_111, %c0_112], %217 {strides = array<i32>} : memref<2x8x8x32xbf16, #tpu.memory_space<vmem>>, vector<1x8x8x32xbf16>,
    return
  }
  func.func @transform_0(%arg0: i32) -> (i32, i32, i32, i32) {
    %c0_i32 = arith.constant 0 : i32
    %c0_i32_0 = arith.constant 0 : i32
    %c0_i32_1 = arith.constant 0 : i32
    %c0_i32_2 = arith.constant 0 : i32
    return %arg0, %c0_i32, %c0_i32_0, %c0_i32_1 : i32, i32, i32, i32
  }
  func.func @transform_1(%arg0: i32) -> (i32, i32, i32, i32) {
    %c0_i32 = arith.constant 0 : i32
    %c0_i32_0 = arith.constant 0 : i32
    %c0_i32_1 = arith.constant 0 : i32
    %c0_i32_2 = arith.constant 0 : i32
    return %arg0, %c0_i32, %c0_i32_0, %c0_i32_1 : i32, i32, i32, i32
  }
  func.func @transform_2(%arg0: i32) -> (i32, i32) {
    %c0_i32 = arith.constant 0 : i32
    %c0_i32_0 = arith.constant 0 : i32
    %c0_i32_1 = arith.constant 0 : i32
    return %c0_i32, %c0_i32_0 : i32, i32
  }
  func.func @transform_3(%arg0: i32) -> (i32, i32) {
    %c0_i32 = arith.constant 0 : i32
    %c0_i32_0 = arith.constant 0 : i32
    %c0_i32_1 = arith.constant 0 : i32
    return %c0_i32, %c0_i32_0 : i32, i32
  }
  func.func @transform_4(%arg0: i32) -> (i32, i32) {
    %c0_i32 = arith.constant 0 : i32
    %c0_i32_0 = arith.constant 0 : i32
    %c0_i32_1 = arith.constant 0 : i32
    return %c0_i32, %c0_i32_0 : i32, i32
  }
  func.func @transform_5(%arg0: i32) -> (i32, i32) {
    %c0_i32 = arith.constant 0 : i32
    %c0_i32_0 = arith.constant 0 : i32
    %c0_i32_1 = arith.constant 0 : i32
    return %c0_i32, %c0_i32_0 : i32, i32
  }
  func.func @transform_6(%arg0: i32) -> (i32, i32) {
    %c0_i32 = arith.constant 0 : i32
    %c0_i32_0 = arith.constant 0 : i32
    %c0_i32_1 = arith.constant 0 : i32
    return %c0_i32, %c0_i32_0 : i32, i32
  }
  func.func @transform_7(%arg0: i32) -> (i32, i32, i32, i32) {
    %c0_i32 = arith.constant 0 : i32
    %c0_i32_0 = arith.constant 0 : i32
    %c0_i32_1 = arith.constant 0 : i32
    %c0_i32_2 = arith.constant 0 : i32
    return %arg0, %c0_i32, %c0_i32_0, %c0_i32_1 : i32, i32, i32, i32
  }
  func.func @transform_8(%arg0: i32) -> (i32, i32, i32, i32) {
    %c0_i32 = arith.constant 0 : i32
    %c0_i32_0 = arith.constant 0 : i32
    %c0_i32_1 = arith.constant 0 : i32
    %c0_i32_2 = arith.constant 0 : i32
    return %arg0, %c0_i32, %c0_i32_0, %c0_i32_1 : i32, i32, i32, i32
  }
}

</mosaic_0001>

<llo_original>
// kernel: tpu_custom_call.1
$region0: #{tpu_custom_call.1}
  #allocation0 [shape = 'u32[]', space=smem, size = 0x4, offset = 0x4, fixed_abs, tag = 'smem constant byte address 0x4 - core index']
  #allocation1 [shape = 'u32[144,128]{1,0:T(1,128)}', space=vmem, size = 0x12000, scoped, tag = 'internal scratch']
  %s0 = inlined_call_operand.vmem [shape: bf16[2,8,8,32], index: 0, kind: input, shape index: {}]
  %s1 = inlined_call_operand.vmem [shape: bf16[2,8,8,32], index: 1, kind: input, shape index: {}]
  %s2 = inlined_call_operand.vmem [shape: f32[56,8], index: 2, kind: input, shape index: {}]
  %s3 = inlined_call_operand.vmem [shape: f32[32,2], index: 3, kind: input, shape index: {}]
  %s4 = inlined_call_operand.vmem [shape: f32[2,32], index: 4, kind: input, shape index: {}]
  %s5 = inlined_call_operand.vmem [shape: f32[32,2], index: 5, kind: input, shape index: {}]
  %s6 = inlined_call_operand.vmem [shape: f32[2,32], index: 6, kind: input, shape index: {}]
  %s7 = inlined_call_operand.hbm [shape: bf16[2,8,8,32], index: 7, kind: output, shape index: {0}]
  %s8 = inlined_call_operand.hbm [shape: bf16[2,8,8,32], index: 8, kind: output, shape index: {1}]
  %9 = xla_tuple %s7, %s8
  %s10 = sld [smem:[#allocation0]]
  $region46: #{tpu_custom_call.1} parent=0
    _
  %s12 = ssub.s32 1, %s10
  %s13 = scalar_select 0, %s12, %s10
  $region1: #{tpu_custom_call.1} parent=0
    #allocation2 [shape = 'u8[32768]{0}', space=vmem, size = 0x8000, scoped, tag = 'output window, operand 0, single buffered']
    #allocation3 [shape = 's32[1]{0}', space=sflag, size = 0x4, scoped, tag = 'scoped memory for tpu_custom_call.1']
    #allocation4 [shape = 'u8[32768]{0}', space=vmem, size = 0x8000, scoped, tag = 'output window, operand 1, single buffered']
    #allocation5 [shape = 's32[1]{0}', space=sflag, size = 0x4, scoped, tag = 'scoped memory for tpu_custom_call.1']
    %14 = vsyncpa [#allocation3], 0
    %15 = vsyncpa [#allocation5], 0
    // Predicated region
    $region2: #{tpu_custom_call.1} parent=1 // pred_check
      _
    $region3: #{tpu_custom_call.1} parent=1 // pred_check_branch
      %17 = sbr.rel (0) target = $region5
    $region4: #{tpu_custom_call.1} parent=1 // pred_region
      _
    $region5: #{tpu_custom_call.1} parent=1 // pred_fallthru
      _
    // Predicated region
    $region6: #{tpu_custom_call.1} parent=1 // pred_check
      _
    $region7: #{tpu_custom_call.1} parent=1 // pred_check_branch
      %19 = sbr.rel (0) target = $region9
    $region8: #{tpu_custom_call.1} parent=1 // pred_region
      _
    $region9: #{tpu_custom_call.1} parent=1 // pred_fallthru
      _
    // Predicated region
    $region10: #{tpu_custom_call.1} parent=1 // pred_check
      _
    $region11: #{tpu_custom_call.1} parent=1 // pred_check_branch
      %21 = sbr.rel (0) target = $region13
    $region12: #{tpu_custom_call.1} parent=1 // pred_region
      _
    $region13: #{tpu_custom_call.1} parent=1 // pred_fallthru
      _
    // Predicated region
    $region14: #{tpu_custom_call.1} parent=1 // pred_check
      _
    $region15: #{tpu_custom_call.1} parent=1 // pred_check_branch
      %23 = sbr.rel (0) target = $region17
    $region16: #{tpu_custom_call.1} parent=1 // pred_region
      _
    $region17: #{tpu_custom_call.1} parent=1 // pred_fallthru
      _
    // Predicated region
    $region18: #{tpu_custom_call.1} parent=1 // pred_check
      _
    $region19: #{tpu_custom_call.1} parent=1 // pred_check_branch
      %25 = sbr.rel (0) target = $region21
    $region20: #{tpu_custom_call.1} parent=1 // pred_region
      _
    $region21: #{tpu_custom_call.1} parent=1 // pred_fallthru
      _
    // Predicated region
    $region22: #{tpu_custom_call.1} parent=1 // pred_check
      _
    $region23: #{tpu_custom_call.1} parent=1 // pred_check_branch
      %27 = sbr.rel (0) target = $region25
    $region24: #{tpu_custom_call.1} parent=1 // pred_region
      _
    $region25: #{tpu_custom_call.1} parent=1 // pred_fallthru
      _
    // Predicated region
    $region26: #{tpu_custom_call.1} parent=1 // pred_check
      _
    $region27: #{tpu_custom_call.1} parent=1 // pred_check_branch
      %29 = sbr.rel (0) target = $region29
    $region28: #{tpu_custom_call.1} parent=1 // pred_region
      _
    $region29: #{tpu_custom_call.1} parent=1 // pred_fallthru
      _
    %v30 = vld [vmem:[%s2] sm:$0xff]
    %v31 = vld [vmem:[%s2 + $0x8] sm:$0xff]
    %v32 = vld [vmem:[%s2 + $0x10] sm:$0xff]
    %v33 = vld [vmem:[%s2 + $0x18] sm:$0xff]
    %v34 = vld [vmem:[%s2 + $0x20] sm:$0xff]
    %v35 = vld [vmem:[%s2 + $0x28] sm:$0xff]
    %v36 = vld [vmem:[%s2 + $0x30] sm:$0xff]
    %v37 = vld [vmem:[%s3] sm:$0xff]
    %v38 = vld [vmem:[%s3 + $0x8] sm:$0xff]
    %v39 = vld [vmem:[%s3 + $0x10] sm:$0xff]
    %v40 = vld [vmem:[%s3 + $0x18] sm:$0xff]
    %v41 = vld [vmem:[%s4] sm:$0x3]
    %v42 = vld [vmem:[%s5] sm:$0xff]
    %v43 = vld [vmem:[%s5 + $0x8] sm:$0xff]
    %v44 = vld [vmem:[%s5 + $0x10] sm:$0xff]
    %v45 = vld [vmem:[%s5 + $0x18] sm:$0xff]
    %v46 = vld [vmem:[%s6] sm:$0x3]
    %v47 = vlaneseq
    %v48 = vshrl.u32 %v47, 7
    %v49 = vld [vmem:[%s0] sm:$0xf]
    %v50 = vld [vmem:[%s0 + $0x4] sm:$0xf]
    %v51 = vld [vmem:[%s0 + $0x8] sm:$0xf]
    %v52 = vld [vmem:[%s0 + $0xc] sm:$0xf]
    %v53 = vld [vmem:[%s0 + $0x10] sm:$0xf]
    %v54 = vld [vmem:[%s0 + $0x14] sm:$0xf]
    %v55 = vld [vmem:[%s0 + $0x18] sm:$0xf]
    %v56 = vld [vmem:[%s0 + $0x1c] sm:$0xf]
    %v57 = vunpack.c.l.bf16 %v49
    %v58 = vunpack.c.l.bf16 %v50
    %v59 = vunpack.c.l.bf16 %v51
    %v60 = vunpack.c.l.bf16 %v52
    %v61 = vunpack.c.l.bf16 %v53
    %v62 = vunpack.c.l.bf16 %v54
    %v63 = vunpack.c.l.bf16 %v55
    %v64 = vunpack.c.l.bf16 %v56
    %v65 = vld [vmem:[%s1] sm:$0xf]
    %v66 = vld [vmem:[%s1 + $0x4] sm:$0xf]
    %v67 = vld [vmem:[%s1 + $0x8] sm:$0xf]
    %v68 = vld [vmem:[%s1 + $0xc] sm:$0xf]
    %v69 = vld [vmem:[%s1 + $0x10] sm:$0xf]
    %v70 = vld [vmem:[%s1 + $0x14] sm:$0xf]
    %v71 = vld [vmem:[%s1 + $0x18] sm:$0xf]
    %v72 = vld [vmem:[%s1 + $0x1c] sm:$0xf]
    %v73 = vunpack.c.l.bf16 %v65
    %v74 = vunpack.c.l.bf16 %v66
    %v75 = vunpack.c.l.bf16 %v67
    %v76 = vunpack.c.l.bf16 %v68
    %v77 = vunpack.c.l.bf16 %v69
    %v78 = vunpack.c.l.bf16 %v70
    %v79 = vunpack.c.l.bf16 %v71
    %v80 = vunpack.c.l.bf16 %v72
    %v81 = vmul.f32 %v57, %v73
    %v82 = vmul.f32 %v58, %v74
    %v83 = vmul.f32 %v59, %v75
    %v84 = vmul.f32 %v60, %v76
    %v85 = vmul.f32 %v61, %v77
    %v86 = vmul.f32 %v62, %v78
    %v87 = vmul.f32 %v63, %v79
    %v88 = vmul.f32 %v64, %v80
    %vm89 = vcmask 261120
    %v90 = vsel %vm89, %v81, -inf
    %91 = vmax.xlane.f32.xlu0 %v90
    %v92 = vpop.xlane.xlu0 %91
    %v93 = vsel %vm89, %v82, -inf
    %94 = vmax.xlane.f32.xlu0 %v93
    %v95 = vpop.xlane.xlu0 %94
    %v96 = vsel %vm89, %v83, -inf
    %97 = vmax.xlane.f32.xlu0 %v96
    %v98 = vpop.xlane.xlu0 %97
    %v99 = vsel %vm89, %v84, -inf
    %100 = vmax.xlane.f32.xlu0 %v99
    %v101 = vpop.xlane.xlu0 %100
    %v102 = vsel %vm89, %v85, -inf
    %103 = vmax.xlane.f32.xlu0 %v102
    %v104 = vpop.xlane.xlu0 %103
    %v105 = vsel %vm89, %v86, -inf
    %106 = vmax.xlane.f32.xlu0 %v105
    %v107 = vpop.xlane.xlu0 %106
    %v108 = vsel %vm89, %v87, -inf
    %109 = vmax.xlane.f32.xlu0 %v108
    %v110 = vpop.xlane.xlu0 %109
    %v111 = vsel %vm89, %v88, -inf
    %112 = vmax.xlane.f32.xlu0 %v111
    %v113 = vpop.xlane.xlu0 %112
    %v122 = vlaneseq
    %v123 = vand.u32 %v122, 127
    %v124 = vlaneseq
    %v125 = vshrl.u32 %v124, 7
    %v126 = vsub.s32 %v123, %v125
    %v127 = vrot.slane %v92, %v126
    %v128 = vlaneseq
    %v129 = vshrl.u32 %v128, 7
    %v130 = vsub.s32 %v123, %v129
    %v131 = vrot.slane %v95, %v130
    %v132 = vlaneseq
    %v133 = vshrl.u32 %v132, 7
    %v134 = vsub.s32 %v123, %v133
    %v135 = vrot.slane %v98, %v134
    %v136 = vlaneseq
    %v137 = vshrl.u32 %v136, 7
    %v138 = vsub.s32 %v123, %v137
    %v139 = vrot.slane %v101, %v138
    %v140 = vlaneseq
    %v141 = vshrl.u32 %v140, 7
    %v142 = vsub.s32 %v123, %v141
    %v143 = vrot.slane %v104, %v142
    %v144 = vlaneseq
    %v145 = vshrl.u32 %v144, 7
    %v146 = vsub.s32 %v123, %v145
    %v147 = vrot.slane %v107, %v146
    %v148 = vlaneseq
    %v149 = vshrl.u32 %v148, 7
    %v150 = vsub.s32 %v123, %v149
    %v151 = vrot.slane %v110, %v150
    %v152 = vlaneseq
    %v153 = vshrl.u32 %v152, 7
    %v154 = vsub.s32 %v123, %v153
    %v155 = vrot.slane %v113, %v154
    %vm156 = vcmask 1041409
    %v157 = vsel %vm156, %v131, %v127
    %vm158 = vcmask 1042434
    %v159 = vsel %vm158, %v135, %v157
    %vm160 = vcmask 1043459
    %v161 = vsel %vm160, %v139, %v159
    %vm162 = vcmask 1044484
    %v163 = vsel %vm162, %v143, %v161
    %vm164 = vcmask 1045509
    %v165 = vsel %vm164, %v147, %v163
    %vm166 = vcmask 1046534
    %v167 = vsel %vm166, %v151, %v165
    %vm168 = vcmask 1047559
    %v169 = vsel %vm168, %v155, %v167
    %v171 = vrot.slane %v169, 5
    %vm172 = vcmp.ge.s32.totalorder %v48, 3
    %vm173 = vcmp.lt.s32.totalorder %v48, 11
    %vm174 = vmand %vm172, %vm173
    %v175 = vsel %vm174, %v171, 0.0
    %v176 = vrot.slane %v169, 6
    %vm177 = vcmp.ge.s32.totalorder %v48, 2
    %vm178 = vcmp.lt.s32.totalorder %v48, 10
    %vm179 = vmand %vm177, %vm178
    %v180 = vsel %vm179, %v176, 0.0
    %v181 = vrot.slane %v169, 7
    %vm182 = vcmp.ge.s32.totalorder %v48, 1
    %vm183 = vcmp.lt.s32.totalorder %v48, 9
    %vm184 = vmand %vm182, %vm183
    %v185 = vsel %vm184, %v181, 0.0
    %v186 = vrot.slane %v169, 1
    %vm187 = vcmp.ge.s32.totalorder %v48, 4294967295
    %vm188 = vcmp.lt.s32.totalorder %v48, 7
    %vm189 = vmand %vm187, %vm188
    %v190 = vsel %vm189, %v186, 0.0
    %v191 = vrot.slane %v169, 2
    %vm192 = vcmp.ge.s32.totalorder %v48, 4294967294
    %vm193 = vcmp.lt.s32.totalorder %v48, 6
    %vm194 = vmand %vm192, %vm193
    %v195 = vsel %vm194, %v191, 0.0
    %v196 = vrot.slane %v169, 3
    %vm197 = vcmp.ge.s32.totalorder %v48, 4294967293
    %vm198 = vcmp.lt.s32.totalorder %v48, 5
    %vm199 = vmand %vm197, %vm198
    %v200 = vsel %vm199, %v196, 0.0
    %202 = vrot.lane.b32.xlu0 %v180, 8
    %v203 = vpop.permute.xlu0 %202
    %206 = vrot.lane.b32.xlu0 %v185, 16
    %v207 = vpop.permute.xlu0 %206
    %v209 = vadd.s32 %v123, 4294967272
    %v210 = vlaneseq
    %v211 = vshrl.u32 %v210, 7
    %v212 = vsub.s32 %v209, %v211
    %v213 = vrot.slane %v92, %v212
    %v214 = vlaneseq
    %v215 = vshrl.u32 %v214, 7
    %v216 = vsub.s32 %v209, %v215
    %v217 = vrot.slane %v95, %v216
    %v218 = vlaneseq
    %v219 = vshrl.u32 %v218, 7
    %v220 = vsub.s32 %v209, %v219
    %v221 = vrot.slane %v98, %v220
    %v222 = vlaneseq
    %v223 = vshrl.u32 %v222, 7
    %v224 = vsub.s32 %v209, %v223
    %v225 = vrot.slane %v101, %v224
    %v226 = vlaneseq
    %v227 = vshrl.u32 %v226, 7
    %v228 = vsub.s32 %v209, %v227
    %v229 = vrot.slane %v104, %v228
    %v230 = vlaneseq
    %v231 = vshrl.u32 %v230, 7
    %v232 = vsub.s32 %v209, %v231
    %v233 = vrot.slane %v107, %v232
    %v234 = vlaneseq
    %v235 = vshrl.u32 %v234, 7
    %v236 = vsub.s32 %v209, %v235
    %v237 = vrot.slane %v110, %v236
    %v238 = vlaneseq
    %v239 = vshrl.u32 %v238, 7
    %v240 = vsub.s32 %v209, %v239
    %v241 = vrot.slane %v113, %v240
    %v242 = vsel %vm156, %v217, %v213
    %v243 = vsel %vm158, %v221, %v242
    %v244 = vsel %vm160, %v225, %v243
    %v245 = vsel %vm162, %v229, %v244
    %v246 = vsel %vm164, %v233, %v245
    %v247 = vsel %vm166, %v237, %v246
    %v248 = vsel %vm168, %v241, %v247
    %251 = vrot.lane.b32.xlu0 %v190, 32
    %v252 = vpop.permute.xlu0 %251
    %255 = vrot.lane.b32.xlu0 %v195, 40
    %v256 = vpop.permute.xlu0 %255
    %259 = vrot.lane.b32.xlu0 %v200, 48
    %v260 = vpop.permute.xlu0 %259
    %vm262 = vcmask 64512
    %v263 = vsel %vm262, %v175, %v203
    %vm264 = vcmask 130048
    %v265 = vsel %vm264, %v263, %v207
    %vm266 = vcmask 195584
    %v267 = vsel %vm266, %v265, %v248
    %v268 = vsel %vm89, %v267, %v252
    %vm269 = vcmask 326656
    %v270 = vsel %vm269, %v268, %v256
    %vm271 = vcmask 392192
    %v272 = vsel %vm271, %v270, %v260
    %vm273 = vcmask 457728
    %v275 = vsel %vm273, %v272, 0
    %277 = vmatprep.subr.mxu0 0.0
    %278 = vmatpush1.msra.mxu0 0.0
    %279 = vmatprep.subr.mxu0 0.0
    %280 = vmatpush1.msra.mxu0 0.0
    %281 = vmatprep.subr.mxu0 0.0
    %282 = vmatpush1.msra.mxu0 0.0
    %283 = vmatprep.subr.mxu0 0.0
    %284 = vmatpush1.msra.mxu0 0.0
    %285 = vmatprep.subr.mxu0 0.0
    %286 = vmatpush1.msra.mxu0 0.0
    %287 = vmatprep.subr.mxu0 0.0
    %288 = vmatpush1.msra.mxu0 0.0
    %289 = vmatprep.subr.mxu0 0.0
    %290 = vmatpush1.msra.mxu0 0.0
    %291 = vmatprep.subr.mxu0 0.0
    %292 = vmatpush1.msra.mxu0 0.0
    %293 = vmatprep.subr.mxu0 0.0
    %294 = vmatpush1.msra.mxu0 0.0
    %295 = vmatprep.subr.mxu0 0.0
    %296 = vmatpush1.msra.mxu0 %v36
    %297 = vmatprep.subr.mxu0 0.0
    %298 = vmatpush1.msra.mxu0 %v35
    %299 = vmatprep.subr.mxu0 0.0
    %300 = vmatpush1.msra.mxu0 %v34
    %301 = vmatprep.subr.mxu0 0.0
    %302 = vmatpush1.msra.mxu0 %v33
    %303 = vmatprep.subr.mxu0 0.0
    %304 = vmatpush1.msra.mxu0 %v32
    %305 = vmatprep.subr.mxu0 0.0
    %306 = vmatpush1.msra.mxu0 %v31
    %307 = vmatprep.subr.mxu0 0.0
    %308 = vmatpush1.msra.mxu0 %v30
    %309 = vmatprep.subr.mxu0 0.0
    %310 = vmatpush2.msra.mxu0 0.0
    %311 = vmatprep.subr.mxu0 0.0
    %312 = vmatpush2.msra.mxu0 0.0
    %313 = vmatprep.subr.mxu0 0.0
    %314 = vmatpush2.msra.mxu0 0.0
    %315 = vmatprep.subr.mxu0 0.0
    %316 = vmatpush2.msra.mxu0 0.0
    %317 = vmatprep.subr.mxu0 0.0
    %318 = vmatpush2.msra.mxu0 0.0
    %319 = vmatprep.subr.mxu0 0.0
    %320 = vmatpush2.msra.mxu0 0.0
    %321 = vmatprep.subr.mxu0 0.0
    %322 = vmatpush2.msra.mxu0 0.0
    %323 = vmatprep.subr.mxu0 0.0
    %324 = vmatpush2.msra.mxu0 0.0
    %325 = vmatprep.subr.mxu0 0.0
    %326 = vmatpush2.msra.mxu0 0.0
    %327 = vmatprep.subr.mxu0 0.0
    %328 = vmatpush2.msra.mxu0 0.0
    %329 = vmatprep.subr.mxu0 0.0
    %330 = vmatpush2.msra.mxu0 0.0
    %331 = vmatprep.subr.mxu0 0.0
    %332 = vmatpush2.msra.mxu0 0.0
    %333 = vmatprep.subr.mxu0 0.0
    %334 = vmatpush2.msra.mxu0 0.0
    %335 = vmatprep.subr.mxu0 0.0
    %336 = vmatpush2.msra.mxu0 0.0
    %337 = vmatprep.subr.mxu0 0.0
    %338 = vmatpush2.msra.mxu0 0.0
    %339 = vmatprep.subr.mxu0 0.0
    %340 = vmatpush2.msra.mxu0 0.0
    %341 = vmatprep.mubr.f32.mxu0 0.0
    %342 = vmatmul.mubr.f32.gmra.mxu0 %v275
    %v343 = vpop.f32.mrf.mxu0
    %v344 = vadd.f32 0.0, %v343
    %v345 = vpop.f32.mrf.mxu0
    %346 = vdwg.mxu0
    %v347 = vxor.u32 %v344, 2147483648
    %v348 = vmul.f32 %v347, 1.442695
    %v349 = vpow.pop %v348
    %v350 = vadd.f32 %v349, 1.0
    %v351 = vrcp.pop %v350
    %v352 = vmul.f32 1.0, %v351
    %v353 = vlaneseq
    %v354 = vshrl.u32 %v353, 7
    %v355 = vsub.s32 0, %v354
    %v356 = vrot.slane %v352, %v355
    %358 = vbcast.lane.b32.xlu0 %v356, 256
    %v359 = vpop.permute.xlu0 %358
    %v360 = vlaneseq
    %v361 = vshrl.u32 %v360, 7
    %v362 = vsub.s32 1, %v361
    %v363 = vrot.slane %v352, %v362
    %365 = vbcast.lane.b32.xlu0 %v363, 256
    %v366 = vpop.permute.xlu0 %365
    %v367 = vlaneseq
    %v368 = vshrl.u32 %v367, 7
    %v369 = vsub.s32 2, %v368
    %v370 = vrot.slane %v352, %v369
    %372 = vbcast.lane.b32.xlu0 %v370, 256
    %v373 = vpop.permute.xlu0 %372
    %v374 = vlaneseq
    %v375 = vshrl.u32 %v374, 7
    %v376 = vsub.s32 3, %v375
    %v377 = vrot.slane %v352, %v376
    %379 = vbcast.lane.b32.xlu0 %v377, 256
    %v380 = vpop.permute.xlu0 %379
    %v381 = vlaneseq
    %v382 = vshrl.u32 %v381, 7
    %v383 = vsub.s32 4, %v382
    %v384 = vrot.slane %v352, %v383
    %386 = vbcast.lane.b32.xlu0 %v384, 256
    %v387 = vpop.permute.xlu0 %386
    %v388 = vlaneseq
    %v389 = vshrl.u32 %v388, 7
    %v390 = vsub.s32 5, %v389
    %v391 = vrot.slane %v352, %v390
    %393 = vbcast.lane.b32.xlu0 %v391, 256
    %v394 = vpop.permute.xlu0 %393
    %v395 = vlaneseq
    %v396 = vshrl.u32 %v395, 7
    %v397 = vsub.s32 6, %v396
    %v398 = vrot.slane %v352, %v397
    %400 = vbcast.lane.b32.xlu0 %v398, 256
    %v401 = vpop.permute.xlu0 %400
    %v402 = vlaneseq
    %v403 = vshrl.u32 %v402, 7
    %v404 = vsub.s32 7, %v403
    %v405 = vrot.slane %v352, %v404
    %407 = vbcast.lane.b32.xlu0 %v405, 256
    %v408 = vpop.permute.xlu0 %407
    %v409 = vmul.f32 %v57, %v359
    %v410 = vmul.f32 %v58, %v366
    %v411 = vmul.f32 %v59, %v373
    %v412 = vmul.f32 %v60, %v380
    %v413 = vmul.f32 %v61, %v387
    %v414 = vmul.f32 %v62, %v394
    %v415 = vmul.f32 %v63, %v401
    %v416 = vmul.f32 %v64, %v408
    %v417 = vsel %vm89, %v409, -inf
    %v418 = vsel %vm89, %v410, -inf
    %v419 = vsel %vm89, %v411, -inf
    %v420 = vsel %vm89, %v412, -inf
    %v421 = vsel %vm89, %v413, -inf
    %v422 = vmax.f32 %v417, %v421
    %v423 = vsel %vm89, %v414, -inf
    %v424 = vmax.f32 %v418, %v423
    %v425 = vsel %vm89, %v415, -inf
    %v426 = vmax.f32 %v419, %v425
    %v427 = vsel %vm89, %v416, -inf
    %v428 = vmax.f32 %v420, %v427
    %v429 = vmax.f32 %v422, %v424
    %v430 = vmax.f32 %v426, %v428
    %v431 = vmax.f32 %v429, %v430
    %v432 = vsel %vm89, %v431, -inf
    %v433 = vrot.slane %v432, 4
    %v434 = vmax.f32 %v432, %v433
    %v435 = vrot.slane %v434, 2
    %v436 = vmax.f32 %v434, %v435
    %v437 = vrot.slane %v436, 1
    %v438 = vmax.f32 %v436, %v437
    %v439 = vmul.f32 %v73, %v359
    %v440 = vmul.f32 %v74, %v366
    %v441 = vmul.f32 %v75, %v373
    %v442 = vmul.f32 %v76, %v380
    %v443 = vmul.f32 %v77, %v387
    %v444 = vmul.f32 %v78, %v394
    %v445 = vmul.f32 %v79, %v401
    %v446 = vmul.f32 %v80, %v408
    %v447 = vsel %vm89, %v439, -inf
    %v448 = vsel %vm89, %v440, -inf
    %v449 = vsel %vm89, %v441, -inf
    %v450 = vsel %vm89, %v442, -inf
    %v451 = vsel %vm89, %v443, -inf
    %v452 = vmax.f32 %v447, %v451
    %v453 = vsel %vm89, %v444, -inf
    %v454 = vmax.f32 %v448, %v453
    %v455 = vsel %vm89, %v445, -inf
    %v456 = vmax.f32 %v449, %v455
    %v457 = vsel %vm89, %v446, -inf
    %v458 = vmax.f32 %v450, %v457
    %v459 = vmax.f32 %v452, %v454
    %v460 = vmax.f32 %v456, %v458
    %v461 = vmax.f32 %v459, %v460
    %v462 = vsel %vm89, %v461, -inf
    %v463 = vrot.slane %v462, 4
    %v464 = vmax.f32 %v462, %v463
    %v465 = vrot.slane %v464, 2
    %v466 = vmax.f32 %v464, %v465
    %v467 = vrot.slane %v466, 1
    %v468 = vmax.f32 %v466, %v467
    %s469 = scalar_lea.vmem %s0, 32
    %v470 = vld [vmem:[%s469] sm:$0xf]
    %v471 = vld [vmem:[%s469 + $0x4] sm:$0xf]
    %v472 = vld [vmem:[%s469 + $0x8] sm:$0xf]
    %v473 = vld [vmem:[%s469 + $0xc] sm:$0xf]
    %v474 = vld [vmem:[%s469 + $0x10] sm:$0xf]
    %v475 = vld [vmem:[%s469 + $0x14] sm:$0xf]
    %v476 = vld [vmem:[%s469 + $0x18] sm:$0xf]
    %v477 = vld [vmem:[%s469 + $0x1c] sm:$0xf]
    %v478 = vunpack.c.l.bf16 %v470
    %v479 = vunpack.c.l.bf16 %v471
    %v480 = vunpack.c.l.bf16 %v472
    %v481 = vunpack.c.l.bf16 %v473
    %v482 = vunpack.c.l.bf16 %v474
    %v483 = vunpack.c.l.bf16 %v475
    %v484 = vunpack.c.l.bf16 %v476
    %v485 = vunpack.c.l.bf16 %v477
    %s486 = scalar_lea.vmem %s1, 32
    %v487 = vld [vmem:[%s486] sm:$0xf]
    %v488 = vld [vmem:[%s486 + $0x4] sm:$0xf]
    %v489 = vld [vmem:[%s486 + $0x8] sm:$0xf]
    %v490 = vld [vmem:[%s486 + $0xc] sm:$0xf]
    %v491 = vld [vmem:[%s486 + $0x10] sm:$0xf]
    %v492 = vld [vmem:[%s486 + $0x14] sm:$0xf]
    %v493 = vld [vmem:[%s486 + $0x18] sm:$0xf]
    %v494 = vld [vmem:[%s486 + $0x1c] sm:$0xf]
    %v495 = vunpack.c.l.bf16 %v487
    %v496 = vunpack.c.l.bf16 %v488
    %v497 = vunpack.c.l.bf16 %v489
    %v498 = vunpack.c.l.bf16 %v490
    %v499 = vunpack.c.l.bf16 %v491
    %v500 = vunpack.c.l.bf16 %v492
    %v501 = vunpack.c.l.bf16 %v493
    %v502 = vunpack.c.l.bf16 %v494
    %v503 = vmul.f32 %v478, %v495
    %v504 = vmul.f32 %v479, %v496
    %v505 = vmul.f32 %v480, %v497
    %v506 = vmul.f32 %v481, %v498
    %v507 = vmul.f32 %v482, %v499
    %v508 = vmul.f32 %v483, %v500
    %v509 = vmul.f32 %v484, %v501
    %v510 = vmul.f32 %v485, %v502
    %v511 = vsel %vm89, %v503, -inf
    %512 = vmax.xlane.f32.xlu0 %v511
    %v513 = vpop.xlane.xlu0 %512
    %v514 = vsel %vm89, %v504, -inf
    %515 = vmax.xlane.f32.xlu0 %v514
    %v516 = vpop.xlane.xlu0 %515
    %v517 = vsel %vm89, %v505, -inf
    %518 = vmax.xlane.f32.xlu0 %v517
    %v519 = vpop.xlane.xlu0 %518
    %v520 = vsel %vm89, %v506, -inf
    %521 = vmax.xlane.f32.xlu0 %v520
    %v522 = vpop.xlane.xlu0 %521
    %v523 = vsel %vm89, %v507, -inf
    %524 = vmax.xlane.f32.xlu0 %v523
    %v525 = vpop.xlane.xlu0 %524
    %v526 = vsel %vm89, %v508, -inf
    %527 = vmax.xlane.f32.xlu0 %v526
    %v528 = vpop.xlane.xlu0 %527
    %v529 = vsel %vm89, %v509, -inf
    %530 = vmax.xlane.f32.xlu0 %v529
    %v531 = vpop.xlane.xlu0 %530
    %v532 = vsel %vm89, %v510, -inf
    %533 = vmax.xlane.f32.xlu0 %v532
    %v534 = vpop.xlane.xlu0 %533
    %v543 = vlaneseq
    %v544 = vshrl.u32 %v543, 7
    %v545 = vsub.s32 %v123, %v544
    %v546 = vrot.slane %v513, %v545
    %v547 = vlaneseq
    %v548 = vshrl.u32 %v547, 7
    %v549 = vsub.s32 %v123, %v548
    %v550 = vrot.slane %v516, %v549
    %v551 = vlaneseq
    %v552 = vshrl.u32 %v551, 7
    %v553 = vsub.s32 %v123, %v552
    %v554 = vrot.slane %v519, %v553
    %v555 = vlaneseq
    %v556 = vshrl.u32 %v555, 7
    %v557 = vsub.s32 %v123, %v556
    %v558 = vrot.slane %v522, %v557
    %v559 = vlaneseq
    %v560 = vshrl.u32 %v559, 7
    %v561 = vsub.s32 %v123, %v560
    %v562 = vrot.slane %v525, %v561
    %v563 = vlaneseq
    %v564 = vshrl.u32 %v563, 7
    %v565 = vsub.s32 %v123, %v564
    %v566 = vrot.slane %v528, %v565
    %v567 = vlaneseq
    %v568 = vshrl.u32 %v567, 7
    %v569 = vsub.s32 %v123, %v568
    %v570 = vrot.slane %v531, %v569
    %v571 = vlaneseq
    %v572 = vshrl.u32 %v571, 7
    %v573 = vsub.s32 %v123, %v572
    %v574 = vrot.slane %v534, %v573
    %v575 = vsel %vm156, %v550, %v546
    %v576 = vsel %vm158, %v554, %v575
    %v577 = vsel %vm160, %v558, %v576
    %v578 = vsel %vm162, %v562, %v577
    %v579 = vsel %vm164, %v566, %v578
    %v580 = vsel %vm166, %v570, %v579
    %v581 = vsel %vm168, %v574, %v580
    %v583 = vrot.slane %v581, 5
    %v584 = vsel %vm174, %v583, 0.0
    %v585 = vrot.slane %v581, 6
    %v586 = vsel %vm179, %v585, 0.0
    %v587 = vrot.slane %v581, 7
    %v588 = vsel %vm184, %v587, 0.0
    %v589 = vrot.slane %v581, 1
    %v590 = vsel %vm189, %v589, 0.0
    %v591 = vrot.slane %v581, 2
    %v592 = vsel %vm194, %v591, 0.0
    %v593 = vrot.slane %v581, 3
    %v594 = vsel %vm199, %v593, 0.0
    %596 = vrot.lane.b32.xlu0 %v586, 8
    %v597 = vpop.permute.xlu0 %596
    %600 = vrot.lane.b32.xlu0 %v588, 16
    %v601 = vpop.permute.xlu0 %600
    %v603 = vlaneseq
    %v604 = vshrl.u32 %v603, 7
    %v605 = vsub.s32 %v209, %v604
    %v606 = vrot.slane %v513, %v605
    %v607 = vlaneseq
    %v608 = vshrl.u32 %v607, 7
    %v609 = vsub.s32 %v209, %v608
    %v610 = vrot.slane %v516, %v609
    %v611 = vlaneseq
    %v612 = vshrl.u32 %v611, 7
    %v613 = vsub.s32 %v209, %v612
    %v614 = vrot.slane %v519, %v613
    %v615 = vlaneseq
    %v616 = vshrl.u32 %v615, 7
    %v617 = vsub.s32 %v209, %v616
    %v618 = vrot.slane %v522, %v617
    %v619 = vlaneseq
    %v620 = vshrl.u32 %v619, 7
    %v621 = vsub.s32 %v209, %v620
    %v622 = vrot.slane %v525, %v621
    %v623 = vlaneseq
    %v624 = vshrl.u32 %v623, 7
    %v625 = vsub.s32 %v209, %v624
    %v626 = vrot.slane %v528, %v625
    %v627 = vlaneseq
    %v628 = vshrl.u32 %v627, 7
    %v629 = vsub.s32 %v209, %v628
    %v630 = vrot.slane %v531, %v629
    %v631 = vlaneseq
    %v632 = vshrl.u32 %v631, 7
    %v633 = vsub.s32 %v209, %v632
    %v634 = vrot.slane %v534, %v633
    %v635 = vsel %vm156, %v610, %v606
    %v636 = vsel %vm158, %v614, %v635
    %v637 = vsel %vm160, %v618, %v636
    %v638 = vsel %vm162, %v622, %v637
    %v639 = vsel %vm164, %v626, %v638
    %v640 = vsel %vm166, %v630, %v639
    %v641 = vsel %vm168, %v634, %v640
    %644 = vrot.lane.b32.xlu0 %v590, 32
    %v645 = vpop.permute.xlu0 %644
    %648 = vrot.lane.b32.xlu0 %v592, 40
    %v649 = vpop.permute.xlu0 %648
    %652 = vrot.lane.b32.xlu0 %v594, 48
    %v653 = vpop.permute.xlu0 %652
    %v655 = vsel %vm262, %v584, %v597
    %v656 = vsel %vm264, %v655, %v601
    %v657 = vsel %vm266, %v656, %v641
    %v658 = vsel %vm89, %v657, %v645
    %v659 = vsel %vm269, %v658, %v649
    %v660 = vsel %vm271, %v659, %v653
    %v662 = vsel %vm273, %v660, 0
    %664 = vmatprep.subr.mxu0 0.0
    %665 = vmatpush1.msra.mxu0 0.0
    %666 = vmatprep.subr.mxu0 0.0
    %667 = vmatpush1.msra.mxu0 0.0
    %668 = vmatprep.subr.mxu0 0.0
    %669 = vmatpush1.msra.mxu0 0.0
    %670 = vmatprep.subr.mxu0 0.0
    %671 = vmatpush1.msra.mxu0 0.0
    %672 = vmatprep.subr.mxu0 0.0
    %673 = vmatpush1.msra.mxu0 0.0
    %674 = vmatprep.subr.mxu0 0.0
    %675 = vmatpush1.msra.mxu0 0.0
    %676 = vmatprep.subr.mxu0 0.0
    %677 = vmatpush1.msra.mxu0 0.0
    %678 = vmatprep.subr.mxu0 0.0
    %679 = vmatpush1.msra.mxu0 0.0
    %680 = vmatprep.subr.mxu0 0.0
    %681 = vmatpush1.msra.mxu0 0.0
    %682 = vmatprep.subr.mxu0 0.0
    %683 = vmatpush1.msra.mxu0 %v36
    %684 = vmatprep.subr.mxu0 0.0
    %685 = vmatpush1.msra.mxu0 %v35
    %686 = vmatprep.subr.mxu0 0.0
    %687 = vmatpush1.msra.mxu0 %v34
    %688 = vmatprep.subr.mxu0 0.0
    %689 = vmatpush1.msra.mxu0 %v33
    %690 = vmatprep.subr.mxu0 0.0
    %691 = vmatpush1.msra.mxu0 %v32
    %692 = vmatprep.subr.mxu0 0.0
    %693 = vmatpush1.msra.mxu0 %v31
    %694 = vmatprep.subr.mxu0 0.0
    %695 = vmatpush1.msra.mxu0 %v30
    %696 = vmatprep.subr.mxu0 0.0
    %697 = vmatpush2.msra.mxu0 0.0
    %698 = vmatprep.subr.mxu0 0.0
    %699 = vmatpush2.msra.mxu0 0.0
    %700 = vmatprep.subr.mxu0 0.0
    %701 = vmatpush2.msra.mxu0 0.0
    %702 = vmatprep.subr.mxu0 0.0
    %703 = vmatpush2.msra.mxu0 0.0
    %704 = vmatprep.subr.mxu0 0.0
    %705 = vmatpush2.msra.mxu0 0.0
    %706 = vmatprep.subr.mxu0 0.0
    %707 = vmatpush2.msra.mxu0 0.0
    %708 = vmatprep.subr.mxu0 0.0
    %709 = vmatpush2.msra.mxu0 0.0
    %710 = vmatprep.subr.mxu0 0.0
    %711 = vmatpush2.msra.mxu0 0.0
    %712 = vmatprep.subr.mxu0 0.0
    %713 = vmatpush2.msra.mxu0 0.0
    %714 = vmatprep.subr.mxu0 0.0
    %715 = vmatpush2.msra.mxu0 0.0
    %716 = vmatprep.subr.mxu0 0.0
    %717 = vmatpush2.msra.mxu0 0.0
    %718 = vmatprep.subr.mxu0 0.0
    %719 = vmatpush2.msra.mxu0 0.0
    %720 = vmatprep.subr.mxu0 0.0
    %721 = vmatpush2.msra.mxu0 0.0
    %722 = vmatprep.subr.mxu0 0.0
    %723 = vmatpush2.msra.mxu0 0.0
    %724 = vmatprep.subr.mxu0 0.0
    %725 = vmatpush2.msra.mxu0 0.0
    %726 = vmatprep.subr.mxu0 0.0
    %727 = vmatpush2.msra.mxu0 0.0
    %728 = vmatprep.mubr.f32.mxu0 0.0
    %729 = vmatmul.mubr.f32.gmra.mxu0 %v662
    %v730 = vpop.f32.mrf.mxu0
    %v731 = vadd.f32 0.0, %v730
    %v732 = vpop.f32.mrf.mxu0
    %733 = vdwg.mxu0
    %v734 = vxor.u32 %v731, 2147483648
    %v735 = vmul.f32 %v734, 1.442695
    %v736 = vpow.pop %v735
    %v737 = vadd.f32 %v736, 1.0
    %v738 = vrcp.pop %v737
    %v739 = vmul.f32 1.0, %v738
    %v740 = vlaneseq
    %v741 = vshrl.u32 %v740, 7
    %v742 = vsub.s32 0, %v741
    %v743 = vrot.slane %v739, %v742
    %745 = vbcast.lane.b32.xlu0 %v743, 256
    %v746 = vpop.permute.xlu0 %745
    %v747 = vlaneseq
    %v748 = vshrl.u32 %v747, 7
    %v749 = vsub.s32 1, %v748
    %v750 = vrot.slane %v739, %v749
    %752 = vbcast.lane.b32.xlu0 %v750, 256
    %v753 = vpop.permute.xlu0 %752
    %v754 = vlaneseq
    %v755 = vshrl.u32 %v754, 7
    %v756 = vsub.s32 2, %v755
    %v757 = vrot.slane %v739, %v756
    %759 = vbcast.lane.b32.xlu0 %v757, 256
    %v760 = vpop.permute.xlu0 %759
    %v761 = vlaneseq
    %v762 = vshrl.u32 %v761, 7
    %v763 = vsub.s32 3, %v762
    %v764 = vrot.slane %v739, %v763
    %766 = vbcast.lane.b32.xlu0 %v764, 256
    %v767 = vpop.permute.xlu0 %766
    %v768 = vlaneseq
    %v769 = vshrl.u32 %v768, 7
    %v770 = vsub.s32 4, %v769
    %v771 = vrot.slane %v739, %v770
    %773 = vbcast.lane.b32.xlu0 %v771, 256
    %v774 = vpop.permute.xlu0 %773
    %v775 = vlaneseq
    %v776 = vshrl.u32 %v775, 7
    %v777 = vsub.s32 5, %v776
    %v778 = vrot.slane %v739, %v777
    %780 = vbcast.lane.b32.xlu0 %v778, 256
    %v781 = vpop.permute.xlu0 %780
    %v782 = vlaneseq
    %v783 = vshrl.u32 %v782, 7
    %v784 = vsub.s32 6, %v783
    %v785 = vrot.slane %v739, %v784
    %787 = vbcast.lane.b32.xlu0 %v785, 256
    %v788 = vpop.permute.xlu0 %787
    %v789 = vlaneseq
    %v790 = vshrl.u32 %v789, 7
    %v791 = vsub.s32 7, %v790
    %v792 = vrot.slane %v739, %v791
    %794 = vbcast.lane.b32.xlu0 %v792, 256
    %v795 = vpop.permute.xlu0 %794
    %v796 = vmul.f32 %v478, %v746
    %v797 = vmul.f32 %v479, %v753
    %v798 = vmul.f32 %v480, %v760
    %v799 = vmul.f32 %v481, %v767
    %v800 = vmul.f32 %v482, %v774
    %v801 = vmul.f32 %v483, %v781
    %v802 = vmul.f32 %v484, %v788
    %v803 = vmul.f32 %v485, %v795
    %v804 = vsel %vm89, %v796, -inf
    %v805 = vsel %vm89, %v797, -inf
    %v806 = vsel %vm89, %v798, -inf
    %v807 = vsel %vm89, %v799, -inf
    %v808 = vsel %vm89, %v800, -inf
    %v809 = vmax.f32 %v804, %v808
    %v810 = vsel %vm89, %v801, -inf
    %v811 = vmax.f32 %v805, %v810
    %v812 = vsel %vm89, %v802, -inf
    %v813 = vmax.f32 %v806, %v812
    %v814 = vsel %vm89, %v803, -inf
    %v815 = vmax.f32 %v807, %v814
    %v816 = vmax.f32 %v809, %v811
    %v817 = vmax.f32 %v813, %v815
    %v818 = vmax.f32 %v816, %v817
    %v819 = vsel %vm89, %v818, -inf
    %v820 = vrot.slane %v819, 4
    %v821 = vmax.f32 %v819, %v820
    %v822 = vrot.slane %v821, 2
    %v823 = vmax.f32 %v821, %v822
    %v824 = vrot.slane %v823, 1
    %v825 = vmax.f32 %v823, %v824
    %v826 = vmul.f32 %v495, %v746
    %v827 = vmul.f32 %v496, %v753
    %v828 = vmul.f32 %v497, %v760
    %v829 = vmul.f32 %v498, %v767
    %v830 = vmul.f32 %v499, %v774
    %v831 = vmul.f32 %v500, %v781
    %v832 = vmul.f32 %v501, %v788
    %v833 = vmul.f32 %v502, %v795
    %v834 = vsel %vm89, %v826, -inf
    %v835 = vsel %vm89, %v827, -inf
    %v836 = vsel %vm89, %v828, -inf
    %v837 = vsel %vm89, %v829, -inf
    %v838 = vsel %vm89, %v830, -inf
    %v839 = vmax.f32 %v834, %v838
    %v840 = vsel %vm89, %v831, -inf
    %v841 = vmax.f32 %v835, %v840
    %v842 = vsel %vm89, %v832, -inf
    %v843 = vmax.f32 %v836, %v842
    %v844 = vsel %vm89, %v833, -inf
    %v845 = vmax.f32 %v837, %v844
    %v846 = vmax.f32 %v839, %v841
    %v847 = vmax.f32 %v843, %v845
    %v848 = vmax.f32 %v846, %v847
    %v849 = vsel %vm89, %v848, -inf
    %v850 = vrot.slane %v849, 4
    %v851 = vmax.f32 %v849, %v850
    %v852 = vrot.slane %v851, 2
    %v853 = vmax.f32 %v851, %v852
    %v854 = vrot.slane %v853, 1
    %v855 = vmax.f32 %v853, %v854
    %vm856 = vcmask 1040384
    %v857 = vsel %vm856, %v438, %v825
    %v858 = vsel %vm856, %v468, %v855
    %v860 = vsel %vm89, %v857, 0
    %862 = vmatprep.subr.mxu0 0.0
    %863 = vmatpush1.msra.mxu0 0.0
    %864 = vmatprep.subr.mxu0 0.0
    %865 = vmatpush1.msra.mxu0 0.0
    %866 = vmatprep.subr.mxu0 0.0
    %867 = vmatpush1.msra.mxu0 0.0
    %868 = vmatprep.subr.mxu0 0.0
    %869 = vmatpush1.msra.mxu0 0.0
    %870 = vmatprep.subr.mxu0 0.0
    %871 = vmatpush1.msra.mxu0 0.0
    %872 = vmatprep.subr.mxu0 0.0
    %873 = vmatpush1.msra.mxu0 0.0
    %874 = vmatprep.subr.mxu0 0.0
    %875 = vmatpush1.msra.mxu0 0.0
    %876 = vmatprep.subr.mxu0 0.0
    %877 = vmatpush1.msra.mxu0 0.0
    %878 = vmatprep.subr.mxu0 0.0
    %879 = vmatpush1.msra.mxu0 0.0
    %880 = vmatprep.subr.mxu0 0.0
    %881 = vmatpush1.msra.mxu0 0.0
    %882 = vmatprep.subr.mxu0 0.0
    %883 = vmatpush1.msra.mxu0 0.0
    %884 = vmatprep.subr.mxu0 0.0
    %885 = vmatpush1.msra.mxu0 0.0
    %886 = vmatprep.subr.mxu0 0.0
    %887 = vmatpush1.msra.mxu0 %v40
    %888 = vmatprep.subr.mxu0 0.0
    %889 = vmatpush1.msra.mxu0 %v39
    %890 = vmatprep.subr.mxu0 0.0
    %891 = vmatpush1.msra.mxu0 %v38
    %892 = vmatprep.subr.mxu0 0.0
    %893 = vmatpush1.msra.mxu0 %v37
    %894 = vmatprep.subr.mxu0 0.0
    %895 = vmatpush2.msra.mxu0 0.0
    %896 = vmatprep.subr.mxu0 0.0
    %897 = vmatpush2.msra.mxu0 0.0
    %898 = vmatprep.subr.mxu0 0.0
    %899 = vmatpush2.msra.mxu0 0.0
    %900 = vmatprep.subr.mxu0 0.0
    %901 = vmatpush2.msra.mxu0 0.0
    %902 = vmatprep.subr.mxu0 0.0
    %903 = vmatpush2.msra.mxu0 0.0
    %904 = vmatprep.subr.mxu0 0.0
    %905 = vmatpush2.msra.mxu0 0.0
    %906 = vmatprep.subr.mxu0 0.0
    %907 = vmatpush2.msra.mxu0 0.0
    %908 = vmatprep.subr.mxu0 0.0
    %909 = vmatpush2.msra.mxu0 0.0
    %910 = vmatprep.subr.mxu0 0.0
    %911 = vmatpush2.msra.mxu0 0.0
    %912 = vmatprep.subr.mxu0 0.0
    %913 = vmatpush2.msra.mxu0 0.0
    %914 = vmatprep.subr.mxu0 0.0
    %915 = vmatpush2.msra.mxu0 0.0
    %916 = vmatprep.subr.mxu0 0.0
    %917 = vmatpush2.msra.mxu0 0.0
    %918 = vmatprep.subr.mxu0 0.0
    %919 = vmatpush2.msra.mxu0 0.0
    %920 = vmatprep.subr.mxu0 0.0
    %921 = vmatpush2.msra.mxu0 0.0
    %922 = vmatprep.subr.mxu0 0.0
    %923 = vmatpush2.msra.mxu0 0.0
    %924 = vmatprep.subr.mxu0 0.0
    %925 = vmatpush2.msra.mxu0 0.0
    %926 = vmatprep.mubr.f32.mxu0 0.0
    %927 = vmatmul.mubr.f32.gmra.mxu0 %v860
    %v928 = vpop.f32.mrf.mxu0
    %v929 = vadd.f32 0.0, %v928
    %v930 = vpop.f32.mrf.mxu0
    %931 = vdwg.mxu0
    %v932 = vmax.f32 %v929, 0.0
    %vm933 = vcmask 15360
    %v935 = vsel %vm933, %v932, 0
    %vm937 = vcmask 1041408
    %v939 = vsel %vm937, %v41, 0
    %941 = vmatprep.subr.mxu0 0.0
    %942 = vmatpush1.msra.mxu0 0.0
    %943 = vmatprep.subr.mxu0 0.0
    %944 = vmatpush1.msra.mxu0 0.0
    %945 = vmatprep.subr.mxu0 0.0
    %946 = vmatpush1.msra.mxu0 0.0
    %947 = vmatprep.subr.mxu0 0.0
    %948 = vmatpush1.msra.mxu0 0.0
    %949 = vmatprep.subr.mxu0 0.0
    %950 = vmatpush1.msra.mxu0 0.0
    %951 = vmatprep.subr.mxu0 0.0
    %952 = vmatpush1.msra.mxu0 0.0
    %953 = vmatprep.subr.mxu0 0.0
    %954 = vmatpush1.msra.mxu0 0.0
    %955 = vmatprep.subr.mxu0 0.0
    %956 = vmatpush1.msra.mxu0 0.0
    %957 = vmatprep.subr.mxu0 0.0
    %958 = vmatpush1.msra.mxu0 0.0
    %959 = vmatprep.subr.mxu0 0.0
    %960 = vmatpush1.msra.mxu0 0.0
    %961 = vmatprep.subr.mxu0 0.0
    %962 = vmatpush1.msra.mxu0 0.0
    %963 = vmatprep.subr.mxu0 0.0
    %964 = vmatpush1.msra.mxu0 0.0
    %965 = vmatprep.subr.mxu0 0.0
    %966 = vmatpush1.msra.mxu0 0.0
    %967 = vmatprep.subr.mxu0 0.0
    %968 = vmatpush1.msra.mxu0 0.0
    %969 = vmatprep.subr.mxu0 0.0
    %970 = vmatpush1.msra.mxu0 0.0
    %971 = vmatprep.subr.mxu0 0.0
    %972 = vmatpush1.msra.mxu0 %v939
    %973 = vmatprep.subr.mxu0 0.0
    %974 = vmatpush2.msra.mxu0 0.0
    %975 = vmatprep.subr.mxu0 0.0
    %976 = vmatpush2.msra.mxu0 0.0
    %977 = vmatprep.subr.mxu0 0.0
    %978 = vmatpush2.msra.mxu0 0.0
    %979 = vmatprep.subr.mxu0 0.0
    %980 = vmatpush2.msra.mxu0 0.0
    %981 = vmatprep.subr.mxu0 0.0
    %982 = vmatpush2.msra.mxu0 0.0
    %983 = vmatprep.subr.mxu0 0.0
    %984 = vmatpush2.msra.mxu0 0.0
    %985 = vmatprep.subr.mxu0 0.0
    %986 = vmatpush2.msra.mxu0 0.0
    %987 = vmatprep.subr.mxu0 0.0
    %988 = vmatpush2.msra.mxu0 0.0
    %989 = vmatprep.subr.mxu0 0.0
    %990 = vmatpush2.msra.mxu0 0.0
    %991 = vmatprep.subr.mxu0 0.0
    %992 = vmatpush2.msra.mxu0 0.0
    %993 = vmatprep.subr.mxu0 0.0
    %994 = vmatpush2.msra.mxu0 0.0
    %995 = vmatprep.subr.mxu0 0.0
    %996 = vmatpush2.msra.mxu0 0.0
    %997 = vmatprep.subr.mxu0 0.0
    %998 = vmatpush2.msra.mxu0 0.0
    %999 = vmatprep.subr.mxu0 0.0
    %1000 = vmatpush2.msra.mxu0 0.0
    %1001 = vmatprep.subr.mxu0 0.0
    %1002 = vmatpush2.msra.mxu0 0.0
    %1003 = vmatprep.subr.mxu0 0.0
    %1004 = vmatpush2.msra.mxu0 0.0
    %1005 = vmatprep.mubr.f32.mxu0 0.0
    %1006 = vmatmul.mubr.f32.gmra.mxu0 %v935
    %v1007 = vpop.f32.mrf.mxu0
    %v1008 = vadd.f32 0.0, %v1007
    %v1009 = vpop.f32.mrf.mxu0
    %1010 = vdwg.mxu0
    %v1011 = vxor.u32 %v1008, 2147483648
    %v1012 = vmul.f32 %v1011, 1.442695
    %v1013 = vpow.pop %v1012
    %v1014 = vadd.f32 %v1013, 1.0
    %v1015 = vrcp.pop %v1014
    %v1016 = vmul.f32 1.0, %v1015
    %v1018 = vsel %vm89, %v858, 0
    %1020 = vmatprep.subr.mxu0 0.0
    %1021 = vmatpush1.msra.mxu0 0.0
    %1022 = vmatprep.subr.mxu0 0.0
    %1023 = vmatpush1.msra.mxu0 0.0
    %1024 = vmatprep.subr.mxu0 0.0
    %1025 = vmatpush1.msra.mxu0 0.0
    %1026 = vmatprep.subr.mxu0 0.0
    %1027 = vmatpush1.msra.mxu0 0.0
    %1028 = vmatprep.subr.mxu0 0.0
    %1029 = vmatpush1.msra.mxu0 0.0
    %1030 = vmatprep.subr.mxu0 0.0
    %1031 = vmatpush1.msra.mxu0 0.0
    %1032 = vmatprep.subr.mxu0 0.0
    %1033 = vmatpush1.msra.mxu0 0.0
    %1034 = vmatprep.subr.mxu0 0.0
    %1035 = vmatpush1.msra.mxu0 0.0
    %1036 = vmatprep.subr.mxu0 0.0
    %1037 = vmatpush1.msra.mxu0 0.0
    %1038 = vmatprep.subr.mxu0 0.0
    %1039 = vmatpush1.msra.mxu0 0.0
    %1040 = vmatprep.subr.mxu0 0.0
    %1041 = vmatpush1.msra.mxu0 0.0
    %1042 = vmatprep.subr.mxu0 0.0
    %1043 = vmatpush1.msra.mxu0 0.0
    %1044 = vmatprep.subr.mxu0 0.0
    %1045 = vmatpush1.msra.mxu0 %v45
    %1046 = vmatprep.subr.mxu0 0.0
    %1047 = vmatpush1.msra.mxu0 %v44
    %1048 = vmatprep.subr.mxu0 0.0
    %1049 = vmatpush1.msra.mxu0 %v43
    %1050 = vmatprep.subr.mxu0 0.0
    %1051 = vmatpush1.msra.mxu0 %v42
    %1052 = vmatprep.subr.mxu0 0.0
    %1053 = vmatpush2.msra.mxu0 0.0
    %1054 = vmatprep.subr.mxu0 0.0
    %1055 = vmatpush2.msra.mxu0 0.0
    %1056 = vmatprep.subr.mxu0 0.0
    %1057 = vmatpush2.msra.mxu0 0.0
    %1058 = vmatprep.subr.mxu0 0.0
    %1059 = vmatpush2.msra.mxu0 0.0
    %1060 = vmatprep.subr.mxu0 0.0
    %1061 = vmatpush2.msra.mxu0 0.0
    %1062 = vmatprep.subr.mxu0 0.0
    %1063 = vmatpush2.msra.mxu0 0.0
    %1064 = vmatprep.subr.mxu0 0.0
    %1065 = vmatpush2.msra.mxu0 0.0
    %1066 = vmatprep.subr.mxu0 0.0
    %1067 = vmatpush2.msra.mxu0 0.0
    %1068 = vmatprep.subr.mxu0 0.0
    %1069 = vmatpush2.msra.mxu0 0.0
    %1070 = vmatprep.subr.mxu0 0.0
    %1071 = vmatpush2.msra.mxu0 0.0
    %1072 = vmatprep.subr.mxu0 0.0
    %1073 = vmatpush2.msra.mxu0 0.0
    %1074 = vmatprep.subr.mxu0 0.0
    %1075 = vmatpush2.msra.mxu0 0.0
    %1076 = vmatprep.subr.mxu0 0.0
    %1077 = vmatpush2.msra.mxu0 0.0
    %1078 = vmatprep.subr.mxu0 0.0
    %1079 = vmatpush2.msra.mxu0 0.0
    %1080 = vmatprep.subr.mxu0 0.0
    %1081 = vmatpush2.msra.mxu0 0.0
    %1082 = vmatprep.subr.mxu0 0.0
    %1083 = vmatpush2.msra.mxu0 0.0
    %1084 = vmatprep.mubr.f32.mxu0 0.0
    %1085 = vmatmul.mubr.f32.gmra.mxu0 %v1018
    %v1086 = vpop.f32.mrf.mxu0
    %v1087 = vadd.f32 0.0, %v1086
    %v1088 = vpop.f32.mrf.mxu0
    %1089 = vdwg.mxu0
    %v1090 = vmax.f32 %v1087, 0.0
    %v1092 = vsel %vm933, %v1090, 0
    %v1095 = vsel %vm937, %v46, 0
    %1097 = vmatprep.subr.mxu0 0.0
    %1098 = vmatpush1.msra.mxu0 0.0
    %1099 = vmatprep.subr.mxu0 0.0
    %1100 = vmatpush1.msra.mxu0 0.0
    %1101 = vmatprep.subr.mxu0 0.0
    %1102 = vmatpush1.msra.mxu0 0.0
    %1103 = vmatprep.subr.mxu0 0.0
    %1104 = vmatpush1.msra.mxu0 0.0
    %1105 = vmatprep.subr.mxu0 0.0
    %1106 = vmatpush1.msra.mxu0 0.0
    %1107 = vmatprep.subr.mxu0 0.0
    %1108 = vmatpush1.msra.mxu0 0.0
    %1109 = vmatprep.subr.mxu0 0.0
    %1110 = vmatpush1.msra.mxu0 0.0
    %1111 = vmatprep.subr.mxu0 0.0
    %1112 = vmatpush1.msra.mxu0 0.0
    %1113 = vmatprep.subr.mxu0 0.0
    %1114 = vmatpush1.msra.mxu0 0.0
    %1115 = vmatprep.subr.mxu0 0.0
    %1116 = vmatpush1.msra.mxu0 0.0
    %1117 = vmatprep.subr.mxu0 0.0
    %1118 = vmatpush1.msra.mxu0 0.0
    %1119 = vmatprep.subr.mxu0 0.0
    %1120 = vmatpush1.msra.mxu0 0.0
    %1121 = vmatprep.subr.mxu0 0.0
    %1122 = vmatpush1.msra.mxu0 0.0
    %1123 = vmatprep.subr.mxu0 0.0
    %1124 = vmatpush1.msra.mxu0 0.0
    %1125 = vmatprep.subr.mxu0 0.0
    %1126 = vmatpush1.msra.mxu0 0.0
    %1127 = vmatprep.subr.mxu0 0.0
    %1128 = vmatpush1.msra.mxu0 %v1095
    %1129 = vmatprep.subr.mxu0 0.0
    %1130 = vmatpush2.msra.mxu0 0.0
    %1131 = vmatprep.subr.mxu0 0.0
    %1132 = vmatpush2.msra.mxu0 0.0
    %1133 = vmatprep.subr.mxu0 0.0
    %1134 = vmatpush2.msra.mxu0 0.0
    %1135 = vmatprep.subr.mxu0 0.0
    %1136 = vmatpush2.msra.mxu0 0.0
    %1137 = vmatprep.subr.mxu0 0.0
    %1138 = vmatpush2.msra.mxu0 0.0
    %1139 = vmatprep.subr.mxu0 0.0
    %1140 = vmatpush2.msra.mxu0 0.0
    %1141 = vmatprep.subr.mxu0 0.0
    %1142 = vmatpush2.msra.mxu0 0.0
    %1143 = vmatprep.subr.mxu0 0.0
    %1144 = vmatpush2.msra.mxu0 0.0
    %1145 = vmatprep.subr.mxu0 0.0
    %1146 = vmatpush2.msra.mxu0 0.0
    %1147 = vmatprep.subr.mxu0 0.0
    %1148 = vmatpush2.msra.mxu0 0.0
    %1149 = vmatprep.subr.mxu0 0.0
    %1150 = vmatpush2.msra.mxu0 0.0
    %1151 = vmatprep.subr.mxu0 0.0
    %1152 = vmatpush2.msra.mxu0 0.0
    %1153 = vmatprep.subr.mxu0 0.0
    %1154 = vmatpush2.msra.mxu0 0.0
    %1155 = vmatprep.subr.mxu0 0.0
    %1156 = vmatpush2.msra.mxu0 0.0
    %1157 = vmatprep.subr.mxu0 0.0
    %1158 = vmatpush2.msra.mxu0 0.0
    %1159 = vmatprep.subr.mxu0 0.0
    %1160 = vmatpush2.msra.mxu0 0.0
    %1161 = vmatprep.mubr.f32.mxu0 0.0
    %1162 = vmatmul.mubr.f32.gmra.mxu0 %v1092
    %v1163 = vpop.f32.mrf.mxu0
    %v1164 = vadd.f32 0.0, %v1163
    %v1165 = vpop.f32.mrf.mxu0
    %1166 = vdwg.mxu0
    %v1167 = vxor.u32 %v1164, 2147483648
    %v1168 = vmul.f32 %v1167, 1.442695
    %v1169 = vpow.pop %v1168
    %v1170 = vadd.f32 %v1169, 1.0
    %v1171 = vrcp.pop %v1170
    %v1172 = vmul.f32 1.0, %v1171
    %v1173 = vlaneseq
    %v1174 = vshrl.u32 %v1173, 7
    %v1175 = vsub.s32 0, %v1174
    %v1176 = vrot.slane %v1016, %v1175
    %v1177 = vmul.f32 %v57, %v1176
    %v1178 = vmul.f32 %v58, %v1176
    %v1179 = vmul.f32 %v59, %v1176
    %v1180 = vmul.f32 %v60, %v1176
    %v1181 = vmul.f32 %v61, %v1176
    %v1182 = vmul.f32 %v62, %v1176
    %v1183 = vmul.f32 %v63, %v1176
    %v1184 = vmul.f32 %v64, %v1176
    %v1185 = vpack.c.bf16 %v1177, %v1177
    %v1186 = vpack.c.bf16 %v1178, %v1178
    %v1187 = vpack.c.bf16 %v1179, %v1179
    %v1188 = vpack.c.bf16 %v1180, %v1180
    %v1189 = vpack.c.bf16 %v1181, %v1181
    %v1190 = vpack.c.bf16 %v1182, %v1182
    %v1191 = vpack.c.bf16 %v1183, %v1183
    %v1192 = vpack.c.bf16 %v1184, %v1184
    %vm1193 = vcmask 257024
    %1194 = vst.msk [vmem:[#allocation2] sm:$0xf] %vm1193, %v1185
    %1195 = vst.msk [vmem:[#allocation2 + $0x4] sm:$0xf] %vm1193, %v1186
    %1196 = vst.msk [vmem:[#allocation2 + $0x8] sm:$0xf] %vm1193, %v1187
    %1197 = vst.msk [vmem:[#allocation2 + $0xc] sm:$0xf] %vm1193, %v1188
    %1198 = vst.msk [vmem:[#allocation2 + $0x10] sm:$0xf] %vm1193, %v1189
    %1199 = vst.msk [vmem:[#allocation2 + $0x14] sm:$0xf] %vm1193, %v1190
    %1200 = vst.msk [vmem:[#allocation2 + $0x18] sm:$0xf] %vm1193, %v1191
    %1201 = vst.msk [vmem:[#allocation2 + $0x1c] sm:$0xf] %vm1193, %v1192
    %v1202 = vld [vmem:[%s1] sm:$0xf]
    %v1203 = vld [vmem:[%s1 + $0x4] sm:$0xf]
    %v1204 = vld [vmem:[%s1 + $0x8] sm:$0xf]
    %v1205 = vld [vmem:[%s1 + $0xc] sm:$0xf]
    %v1206 = vld [vmem:[%s1 + $0x10] sm:$0xf]
    %v1207 = vld [vmem:[%s1 + $0x14] sm:$0xf]
    %v1208 = vld [vmem:[%s1 + $0x18] sm:$0xf]
    %v1209 = vld [vmem:[%s1 + $0x1c] sm:$0xf]
    %v1210 = vunpack.c.l.bf16 %v1202
    %v1211 = vunpack.c.l.bf16 %v1203
    %v1212 = vunpack.c.l.bf16 %v1204
    %v1213 = vunpack.c.l.bf16 %v1205
    %v1214 = vunpack.c.l.bf16 %v1206
    %v1215 = vunpack.c.l.bf16 %v1207
    %v1216 = vunpack.c.l.bf16 %v1208
    %v1217 = vunpack.c.l.bf16 %v1209
    %v1218 = vlaneseq
    %v1219 = vshrl.u32 %v1218, 7
    %v1220 = vsub.s32 0, %v1219
    %v1221 = vrot.slane %v1172, %v1220
    %v1222 = vmul.f32 %v1210, %v1221
    %v1223 = vmul.f32 %v1211, %v1221
    %v1224 = vmul.f32 %v1212, %v1221
    %v1225 = vmul.f32 %v1213, %v1221
    %v1226 = vmul.f32 %v1214, %v1221
    %v1227 = vmul.f32 %v1215, %v1221
    %v1228 = vmul.f32 %v1216, %v1221
    %v1229 = vmul.f32 %v1217, %v1221
    %v1230 = vpack.c.bf16 %v1222, %v1222
    %v1231 = vpack.c.bf16 %v1223, %v1223
    %v1232 = vpack.c.bf16 %v1224, %v1224
    %v1233 = vpack.c.bf16 %v1225, %v1225
    %v1234 = vpack.c.bf16 %v1226, %v1226
    %v1235 = vpack.c.bf16 %v1227, %v1227
    %v1236 = vpack.c.bf16 %v1228, %v1228
    %v1237 = vpack.c.bf16 %v1229, %v1229
    %1238 = vst.msk [vmem:[#allocation4] sm:$0xf] %vm1193, %v1230
    %1239 = vst.msk [vmem:[#allocation4 + $0x4] sm:$0xf] %vm1193, %v1231
    %1240 = vst.msk [vmem:[#allocation4 + $0x8] sm:$0xf] %vm1193, %v1232
    %1241 = vst.msk [vmem:[#allocation4 + $0xc] sm:$0xf] %vm1193, %v1233
    %1242 = vst.msk [vmem:[#allocation4 + $0x10] sm:$0xf] %vm1193, %v1234
    %1243 = vst.msk [vmem:[#allocation4 + $0x14] sm:$0xf] %vm1193, %v1235
    %1244 = vst.msk [vmem:[#allocation4 + $0x18] sm:$0xf] %vm1193, %v1236
    %1245 = vst.msk [vmem:[#allocation4 + $0x1c] sm:$0xf] %vm1193, %v1237
    %v1246 = vld [vmem:[%s469] sm:$0xf]
    %v1247 = vld [vmem:[%s469 + $0x4] sm:$0xf]
    %v1248 = vld [vmem:[%s469 + $0x8] sm:$0xf]
    %v1249 = vld [vmem:[%s469 + $0xc] sm:$0xf]
    %v1250 = vld [vmem:[%s469 + $0x10] sm:$0xf]
    %v1251 = vld [vmem:[%s469 + $0x14] sm:$0xf]
    %v1252 = vld [vmem:[%s469 + $0x18] sm:$0xf]
    %v1253 = vld [vmem:[%s469 + $0x1c] sm:$0xf]
    %v1254 = vunpack.c.l.bf16 %v1246
    %v1255 = vunpack.c.l.bf16 %v1247
    %v1256 = vunpack.c.l.bf16 %v1248
    %v1257 = vunpack.c.l.bf16 %v1249
    %v1258 = vunpack.c.l.bf16 %v1250
    %v1259 = vunpack.c.l.bf16 %v1251
    %v1260 = vunpack.c.l.bf16 %v1252
    %v1261 = vunpack.c.l.bf16 %v1253
    %v1262 = vlaneseq
    %v1263 = vshrl.u32 %v1262, 7
    %v1264 = vsub.s32 1, %v1263
    %v1265 = vrot.slane %v1016, %v1264
    %v1266 = vmul.f32 %v1254, %v1265
    %v1267 = vmul.f32 %v1255, %v1265
    %v1268 = vmul.f32 %v1256, %v1265
    %v1269 = vmul.f32 %v1257, %v1265
    %v1270 = vmul.f32 %v1258, %v1265
    %v1271 = vmul.f32 %v1259, %v1265
    %v1272 = vmul.f32 %v1260, %v1265
    %v1273 = vmul.f32 %v1261, %v1265
    %v1274 = vpack.c.bf16 %v1266, %v1266
    %v1275 = vpack.c.bf16 %v1267, %v1267
    %v1276 = vpack.c.bf16 %v1268, %v1268
    %v1277 = vpack.c.bf16 %v1269, %v1269
    %v1278 = vpack.c.bf16 %v1270, %v1270
    %v1279 = vpack.c.bf16 %v1271, %v1271
    %v1280 = vpack.c.bf16 %v1272, %v1272
    %v1281 = vpack.c.bf16 %v1273, %v1273
    %s1282 = scalar_lea.vmem [#allocation2], 32
    %1283 = vst.msk [vmem:[%s1282] sm:$0xf] %vm1193, %v1274
    %1284 = vst.msk [vmem:[%s1282 + $0x4] sm:$0xf] %vm1193, %v1275
    %1285 = vst.msk [vmem:[%s1282 + $0x8] sm:$0xf] %vm1193, %v1276
    %1286 = vst.msk [vmem:[%s1282 + $0xc] sm:$0xf] %vm1193, %v1277
    %1287 = vst.msk [vmem:[%s1282 + $0x10] sm:$0xf] %vm1193, %v1278
    %1288 = vst.msk [vmem:[%s1282 + $0x14] sm:$0xf] %vm1193, %v1279
    %1289 = vst.msk [vmem:[%s1282 + $0x18] sm:$0xf] %vm1193, %v1280
    %1290 = vst.msk [vmem:[%s1282 + $0x1c] sm:$0xf] %vm1193, %v1281
    %v1291 = vld [vmem:[%s486] sm:$0xf]
    %v1292 = vld [vmem:[%s486 + $0x4] sm:$0xf]
    %v1293 = vld [vmem:[%s486 + $0x8] sm:$0xf]
    %v1294 = vld [vmem:[%s486 + $0xc] sm:$0xf]
    %v1295 = vld [vmem:[%s486 + $0x10] sm:$0xf]
    %v1296 = vld [vmem:[%s486 + $0x14] sm:$0xf]
    %v1297 = vld [vmem:[%s486 + $0x18] sm:$0xf]
    %v1298 = vld [vmem:[%s486 + $0x1c] sm:$0xf]
    %v1299 = vunpack.c.l.bf16 %v1291
    %v1300 = vunpack.c.l.bf16 %v1292
    %v1301 = vunpack.c.l.bf16 %v1293
    %v1302 = vunpack.c.l.bf16 %v1294
    %v1303 = vunpack.c.l.bf16 %v1295
    %v1304 = vunpack.c.l.bf16 %v1296
    %v1305 = vunpack.c.l.bf16 %v1297
    %v1306 = vunpack.c.l.bf16 %v1298
    %v1307 = vlaneseq
    %v1308 = vshrl.u32 %v1307, 7
    %v1309 = vsub.s32 1, %v1308
    %v1310 = vrot.slane %v1172, %v1309
    %v1311 = vmul.f32 %v1299, %v1310
    %v1312 = vmul.f32 %v1300, %v1310
    %v1313 = vmul.f32 %v1301, %v1310
    %v1314 = vmul.f32 %v1302, %v1310
    %v1315 = vmul.f32 %v1303, %v1310
    %v1316 = vmul.f32 %v1304, %v1310
    %v1317 = vmul.f32 %v1305, %v1310
    %v1318 = vmul.f32 %v1306, %v1310
    %v1319 = vpack.c.bf16 %v1311, %v1311
    %v1320 = vpack.c.bf16 %v1312, %v1312
    %v1321 = vpack.c.bf16 %v1313, %v1313
    %v1322 = vpack.c.bf16 %v1314, %v1314
    %v1323 = vpack.c.bf16 %v1315, %v1315
    %v1324 = vpack.c.bf16 %v1316, %v1316
    %v1325 = vpack.c.bf16 %v1317, %v1317
    %v1326 = vpack.c.bf16 %v1318, %v1318
    %s1327 = scalar_lea.vmem [#allocation4], 32
    %1328 = vst.msk [vmem:[%s1327] sm:$0xf] %vm1193, %v1319
    %1329 = vst.msk [vmem:[%s1327 + $0x4] sm:$0xf] %vm1193, %v1320
    %1330 = vst.msk [vmem:[%s1327 + $0x8] sm:$0xf] %vm1193, %v1321
    %1331 = vst.msk [vmem:[%s1327 + $0xc] sm:$0xf] %vm1193, %v1322
    %1332 = vst.msk [vmem:[%s1327 + $0x10] sm:$0xf] %vm1193, %v1323
    %1333 = vst.msk [vmem:[%s1327 + $0x14] sm:$0xf] %vm1193, %v1324
    %1334 = vst.msk [vmem:[%s1327 + $0x18] sm:$0xf] %vm1193, %v1325
    %1335 = vst.msk [vmem:[%s1327 + $0x1c] sm:$0xf] %vm1193, %v1326
    // Predicated region
    $region30: #{tpu_custom_call.1} parent=1 // pred_check
      _
    $region31: #{tpu_custom_call.1} parent=1 // pred_check_branch
      %1337 = sbr.rel (0) target = $region33
    $region32: #{tpu_custom_call.1} parent=1 // pred_region
      %s1339 = ssub.s32 1024, 1024
      %1340 = vsyncadd [#allocation3], %s1339
      %s1341 = sshll.u32 [#allocation2], 4
      %s1342 = int_to_ptr.vmem [resolvable:$true] %s1341
      %1347 = dma.vmem_to_hbm [thread:$0]  %s1342, 1024, %s7, [#allocation3], 64, 64, 4
    $region33: #{tpu_custom_call.1} parent=1 // pred_fallthru
      _
    // Predicated region
    $region34: #{tpu_custom_call.1} parent=1 // pred_check
      _
    $region35: #{tpu_custom_call.1} parent=1 // pred_check_branch
      %1349 = sbr.rel (0) target = $region37
    $region36: #{tpu_custom_call.1} parent=1 // pred_region
      %s1351 = ssub.s32 1024, 1024
      %1352 = vsyncadd [#allocation5], %s1351
      %s1353 = sshll.u32 [#allocation4], 4
      %s1354 = int_to_ptr.vmem [resolvable:$true] %s1353
      %1359 = dma.vmem_to_hbm [thread:$0]  %s1354, 1024, %s8, [#allocation5], 64, 64, 4
    $region37: #{tpu_custom_call.1} parent=1 // pred_fallthru
      _
    // Predicated region
    $region38: #{tpu_custom_call.1} parent=1 // pred_check
      _
    $region39: #{tpu_custom_call.1} parent=1 // pred_check_branch
      %1361 = sbr.rel (0) target = $region41
    $region40: #{tpu_custom_call.1} parent=1 // pred_region
      %1362 = dma.done [#allocation3], 1024
    $region41: #{tpu_custom_call.1} parent=1 // pred_fallthru
      _
    // Predicated region
    $region42: #{tpu_custom_call.1} parent=1 // pred_check
      _
    $region43: #{tpu_custom_call.1} parent=1 // pred_check_branch
      %1364 = sbr.rel (0) target = $region45
    $region44: #{tpu_custom_call.1} parent=1 // pred_region
      %1365 = dma.done [#allocation5], 1024
    $region45: #{tpu_custom_call.1} parent=1 // pred_fallthru
      _
    %1366 = vsyncpa [#allocation3], 1
    %1367 = vsyncpa [#allocation5], 1

</llo_original>
